<compile_context>
chip_gen: v6e
topology: v6e:2x2x1
jax: 0.10.0
libtpu: 0.0.40
codegen_flags: <defaults>
</compile_context>

<pallas_src>
import functools

import jax
import jax.numpy as jnp
from jax.experimental import pallas as pl
from jax.experimental.pallas import tpu as pltpu


def _round_up(x, m):
    return (x + m - 1) // m * m


_VMEM_WORK_BUDGET = 40 * 1024 * 1024   # per-step block budget; safe on v7x 64 MiB/TC
_VMEM_LIMIT = 48 * 1024 * 1024         # scoped VMEM limit for both passes
_MAX_TILE_M = 2048                     # amortizes ~0.35us/step on v5e/v6e long grids


def _pick_tile_m(M, Kp, Cp, out_bytes, store_intermediate):
    """Largest M-tile (multiple of 16) whose double-buffered blocks fit the budget."""
    if store_intermediate:
        row = 2 * (Kp * 2 + Cp * 2)                       # pass 1: patches + bf16 y
        row = max(row, 2 * (Cp * 2 + Cp * out_bytes))     # pass 2: y in + out
    else:
        row = max(2 * (Kp * 2), 2 * (Kp * 2 + Cp * out_bytes))   # recompute pass 2
    fixed = 2 * Kp * Cp * 2 + 2 * 8 * Cp * 4 + 4 * Cp * 4        # weights/stats/scale
    cap = max(16, (_VMEM_WORK_BUDGET - fixed) // max(row, 1))
    tile = min(_MAX_TILE_M, cap, _round_up(M, 16))
    return max(16, (tile // 16) * 16)


# ---------------------------------------------------------------------------
# Pass 1: conv-as-matmul per M tile + per-tile channel statistics
#         (optionally also stores the bf16 conv intermediate).
# ---------------------------------------------------------------------------
def _write_tile_stats(stat_ref, y):
    """Rows 0/1 of the (8, Cp) stats block = per-tile [sum ; sum-of-squares]."""
    s = jnp.sum(y, axis=0, keepdims=True)        # (1, Cp) f32
    q = jnp.sum(y * y, axis=0, keepdims=True)    # (1, Cp) f32
    rows = jax.lax.broadcasted_iota(jnp.int32, (8, y.shape[1]), 0)
    stat_ref[...] = jnp.where(rows == 0, s, jnp.where(rows == 1, q, 0.0))


def _conv_stats_store_kernel(p_ref, w_ref, y_ref, stat_ref):
    y = jnp.dot(p_ref[...], w_ref[...], preferred_element_type=jnp.float32)
    y_ref[...] = y.astype(y_ref.dtype)           # bf16 conv intermediate for pass 2
    _write_tile_stats(stat_ref, y)


def _conv_stats_kernel(p_ref, w_ref, stat_ref):
    y = jnp.dot(p_ref[...], w_ref[...], preferred_element_type=jnp.float32)
    _write_tile_stats(stat_ref, y)


# ---------------------------------------------------------------------------
# Pass 2: BN scale/shift + LeakyReLU (elementwise, or fused conv recompute).
# ---------------------------------------------------------------------------
def _bn_lrelu_kernel(y_ref, scale_ref, shift_ref, o_ref, *, slope):
    y = y_ref[...].astype(jnp.float32) * scale_ref[...] + shift_ref[...]
    o_ref[...] = jnp.where(y >= 0.0, y, slope * y).astype(o_ref.dtype)


def _conv_bn_lrelu_kernel(p_ref, w_ref, scale_ref, shift_ref, o_ref, *, slope):
    y = jnp.dot(p_ref[...], w_ref[...], preferred_element_type=jnp.float32)
    y = y * scale_ref[...] + shift_ref[...]
    o_ref[...] = jnp.where(y >= 0.0, y, slope * y).astype(o_ref.dtype)


@functools.partial(
    jax.jit, static_argnames=("stride", "padding", "eps", "relu_slope", "tile_m"))
def conv_block_forward(x_nchw, weight_oihw, bias, gamma, beta, *,
                       stride=1, padding=1, eps=1e-5, relu_slope=0.2,
                       tile_m=None):
    """ConvBlock forward. x_nchw: (N, Cin, H, W) -> (N, Cout, Hout, Wout)."""
    N, Cin, H, W = x_nchw.shape
    Cout, Cin_w, KH, KW = weight_oihw.shape
    assert Cin_w == Cin
    sh = sw = int(stride)
    ph = pw = int(padding)

    Hout = (H + 2 * ph - KH) // sh + 1
    Wout = (W + 2 * pw - KW) // sw + 1
    M = N * Hout * Wout
    K = KH * KW * Cin
    out_dtype = x_nchw.dtype
    out_bytes = int(jnp.dtype(out_dtype).itemsize)

    # Lane-dense padded sizes (K, Cout -> multiples of 128).
    Kp = _round_up(K, 128)
    Cp = _round_up(Cout, 128)

    # Store the bf16 conv intermediate iff cheaper than re-streaming the patches.
    store_intermediate = Kp > 2 * Cp

    if tile_m is None:
        tile_m_eff = _pick_tile_m(M, Kp, Cp, out_bytes, store_intermediate)
    else:
        tile_m_eff = max(8, _round_up(min(int(tile_m), _round_up(M, 8)), 8))
    Mp = _round_up(M, tile_m_eff)
    n_tiles = Mp // tile_m_eff

    # --- glue: NCHW -> NHWC (bf16), spatial zero-pad, im2col built in place -----
    x_nhwc = jnp.transpose(x_nchw, (0, 2, 3, 1)).astype(jnp.bfloat16)
    xp = jnp.pad(x_nhwc, ((0, 0), (ph, ph), (pw, pw), (0, 0)))
    patches = jnp.zeros((Mp, Kp), jnp.bfloat16)   # pad rows/cols are exact no-ops
    col = 0
    for kh in range(KH):                          # patch column layout: [kh, kw, cin]
        for kw in range(KW):
            tap = xp[:, kh:kh + Hout * sh:sh, kw:kw + Wout * sw:sw, :]
            patches = jax.lax.dynamic_update_slice(
                patches, tap.reshape(M, Cin), (0, col))
            col += Cin

    # weights: (Cout, Cin, KH, KW) -> (K, Cout) matching the [kh, kw, cin] order.
    w_mat = jnp.transpose(weight_oihw, (2, 3, 1, 0)).reshape(K, Cout)
    w_mat = jnp.pad(w_mat, ((0, Kp - K), (0, Cp - Cout))).astype(jnp.bfloat16)

    cparams = pltpu.CompilerParams(
        dimension_semantics=("parallel",),        # per-tile outputs: no cross-tile deps
        vmem_limit_bytes=_VMEM_LIMIT)

    p_spec = pl.BlockSpec((tile_m_eff, Kp), lambda i: (i, 0))
    w_spec = pl.BlockSpec((Kp, Cp), lambda i: (0, 0))
    stats_shape = jax.ShapeDtypeStruct((8 * n_tiles, Cp), jnp.float32)
    stats_spec = pl.BlockSpec((8, Cp), lambda i: (i, 0))

    # --- pass 1: conv matmul + per-tile batch statistics ------------------------
    if store_intermediate:
        cost1 = pl.CostEstimate(
            flops=2 * Mp * Kp * Cp, transcendentals=0,
            bytes_accessed=Mp * Kp * 2 + Kp * Cp * 2 + Mp * Cp * 2
                           + n_tiles * 8 * Cp * 4)
        y_int, stats = pl.pallas_call(
            _conv_stats_store_kernel,
            out_shape=(jax.ShapeDtypeStruct((Mp, Cp), jnp.bfloat16), stats_shape),
            grid=(n_tiles,),
            in_specs=[p_spec, w_spec],
            out_specs=(pl.BlockSpec((tile_m_eff, Cp), lambda i: (i, 0)), stats_spec),
            compiler_params=cparams,
            cost_estimate=cost1,
        )(patches, w_mat)
    else:
        cost1 = pl.CostEstimate(
            flops=2 * Mp * Kp * Cp, transcendentals=0,
            bytes_accessed=Mp * Kp * 2 + Kp * Cp * 2 + n_tiles * 8 * Cp * 4)
        y_int = None
        stats = pl.pallas_call(
            _conv_stats_kernel,
            out_shape=stats_shape,
            grid=(n_tiles,),
            in_specs=[p_spec, w_spec],
            out_specs=stats_spec,
            compiler_params=cparams,
            cost_estimate=cost1,
        )(patches, w_mat)

    # --- tiny finalize (per-channel, f32): fold conv bias + BN affine -----------
    gamma_p = jnp.pad(gamma.astype(jnp.float32), (0, Cp - Cout))
    beta_p = jnp.pad(beta.astype(jnp.float32), (0, Cp - Cout))
    bias_p = jnp.pad(bias.astype(jnp.float32), (0, Cp - Cout))

    stats = stats.reshape(n_tiles, 8, Cp)
    cnt = jnp.float32(M)                          # pad rows contribute exact zeros
    sum_c = jnp.sum(stats[:, 0, :], axis=0)
    sq_c = jnp.sum(stats[:, 1, :], axis=0)
    mean0 = sum_c / cnt                           # mean of conv output (no bias)
    var0 = jnp.maximum(sq_c / cnt - mean0 * mean0, 0.0)   # biased variance
    scale = gamma_p * jax.lax.rsqrt(var0 + eps)
    # mean of (conv + bias) is mean0 + bias, so the conv bias cancels exactly in
    # training-mode BN; keep the explicit formula for clarity.
    shift = beta_p + (bias_p - (mean0 + bias_p)) * scale
    scale = scale[None, :]
    shift = shift[None, :]

    # --- pass 2: normalize + affine + LeakyReLU (rows independent) --------------
    cs_spec = pl.BlockSpec((1, Cp), lambda i: (0, 0))
    o_spec = pl.BlockSpec((tile_m_eff, Cp), lambda i: (i, 0))

    if store_intermediate:
        cost2 = pl.CostEstimate(
            flops=4 * Mp * Cp, transcendentals=0,
            bytes_accessed=Mp * Cp * 2 + Mp * Cp * out_bytes + 2 * Cp * 4)
        out_flat = pl.pallas_call(
            functools.partial(_bn_lrelu_kernel, slope=relu_slope),
            out_shape=jax.ShapeDtypeStruct((Mp, Cp), out_dtype),
            grid=(n_tiles,),
            in_specs=[pl.BlockSpec((tile_m_eff, Cp), lambda i: (i, 0)),
                      cs_spec, cs_spec],
            out_specs=o_spec,
            compiler_params=cparams,
            cost_estimate=cost2,
        )(y_int, scale, shift)
    else:
        cost2 = pl.CostEstimate(
            flops=2 * Mp * Kp * Cp + 4 * Mp * Cp, transcendentals=0,
            bytes_accessed=Mp * Kp * 2 + Kp * Cp * 2 + 2 * Cp * 4
                           + Mp * Cp * out_bytes)
        out_flat = pl.pallas_call(
            functools.partial(_conv_bn_lrelu_kernel, slope=relu_slope),
            out_shape=jax.ShapeDtypeStruct((Mp, Cp), out_dtype),
            grid=(n_tiles,),
            in_specs=[p_spec, w_spec, cs_spec, cs_spec],
            out_specs=o_spec,
            compiler_params=cparams,
            cost_estimate=cost2,
        )(patches, w_mat, scale, shift)

    # --- glue: drop padding, back to NCHW ----------------------------------------
    out_nhwc = out_flat[:M, :Cout].reshape(N, Hout, Wout, Cout)
    # TODO(synk): if the downstream consumer accepts NHWC, return out_nhwc directly
    # and skip this transpose (a full extra read+write of the output).
    return jnp.transpose(out_nhwc, (0, 3, 1, 2))


def _reference(x, w, b, gamma, beta, *, eps=1e-5, slope=0.2,
               conv_dtype=jnp.float32):
    """Pure-JAX reference matching the PyTorch module (training-mode BN)."""
    y = jax.lax.conv_general_dilated(
        x.astype(conv_dtype), w.astype(conv_dtype),
        window_strides=(1, 1), padding=((1, 1), (1, 1)),
        dimension_numbers=("NCHW", "OIHW", "NCHW"),
        preferred_element_type=jnp.float32)
    y = y + b[None, :, None, None]
    mean = jnp.mean(y, axis=(0, 2, 3), keepdims=True)
    var = jnp.mean(jnp.square(y - mean), axis=(0, 2, 3), keepdims=True)
    y = (y - mean) * jax.lax.rsqrt(var + eps)
    y = y * gamma[None, :, None, None] + beta[None, :, None, None]
    return jnp.where(y >= 0.0, y, slope * y)


def _run_case(key, N, Cin, Cout, H, W, tile_m, tol_bf16):
    k1, k2, k3, k4, k5 = jax.random.split(key, 5)
    x = jax.random.normal(k1, (N, Cin, H, W), jnp.float32)
    weight = 0.1 * jax.random.normal(k2, (Cout, Cin, 3, 3), jnp.float32)
    bias = 0.1 * jax.random.normal(k3, (Cout,), jnp.float32)
    gamma = 1.0 + 0.1 * jax.random.normal(k4, (Cout,), jnp.float32)
    beta = 0.1 * jax.random.normal(k5, (Cout,), jnp.float32)

    out = conv_block_forward(x, weight, bias, gamma, beta,
                             stride=1, padding=1, eps=1e-5, relu_slope=0.2,
                             tile_m=tile_m)
    out = jax.block_until_ready(out)
    assert out.shape == (N, Cout, H, W)

    # Check against a reference on the same bf16 conv-input precision.
    ref_bf16 = jax.block_until_ready(
        _reference(x, weight, bias, gamma, beta, conv_dtype=jnp.bfloat16))
    assert jnp.allclose(out, ref_bf16, atol=tol_bf16, rtol=tol_bf16), float(
        jnp.max(jnp.abs(out - ref_bf16)))

    # Sanity check against the full-f32 PyTorch-faithful reference.
    ref_f32 = jax.block_until_ready(
        _reference(x, weight, bias, gamma, beta, conv_dtype=jnp.float32))
    assert jnp.allclose(out, ref_f32, atol=6e-2, rtol=6e-2), float(
        jnp.max(jnp.abs(out - ref_f32)))


if __name__ == "__main__":
    key = jax.random.PRNGKey(0)
    ka, kb = jax.random.split(key, 2)

    # Case 1: tiny channels (Kp <= 2*Cp -> fused recompute path), auto tile_m.
    _run_case(ka, N=2, Cin=4, Cout=8, H=16, W=16, tile_m=None, tol_bf16=4e-3)

    # Case 2: Kp > 2*Cp -> stored bf16-intermediate path; odd spatial dims and
    # tile_m=128 exercise zero-padded rows and the multi-tile stats combine.
    # (Looser tolerance: the conv activations are rounded to bf16 once.)
    _run_case(kb, N=2, Cin=32, Cout=8, H=13, W=11, tile_m=128, tol_bf16=2.5e-2)

    print("KERNEL_OK")
</pallas_src>

<mosaic_0001>
module attributes {stable_mosaic.version = 11 : i64} {
  func.func @_conv_stats_kernel(%arg0: i32, %arg1: memref<512x128xbf16, #tpu.memory_space<vmem>>, %arg2: memref<128x128xbf16, #tpu.memory_space<vmem>>, %arg3: memref<8x128xf32, #tpu.memory_space<vmem>>) attributes {dimension_semantics = [#tpu.dimension_semantics<parallel>], iteration_bounds = array<i64: 1>, scalar_prefetch = 0 : i64, scratch_operands = 0 : i64, tpu.core_type = #tpu.core_type<tc>, window_params = [{transform_indices = @transform_0, window_bounds = array<i64: 512, 128>}, {pipeline_mode = #tpu.pipeline_mode<synchronous>, transform_indices = @transform_1, window_bounds = array<i64: 128, 128>}, {transform_indices = @transform_2, window_bounds = array<i64: 8, 128>}]} {
    %c0 = arith.constant 0 : index
    %c0_0 = arith.constant 0 : index
    %0 = vector.load %arg1[%c0, %c0_0] : memref<512x128xbf16, #tpu.memory_space<vmem>>, vector<512x128xbf16>
    %c0_1 = arith.constant 0 : index
    %c0_2 = arith.constant 0 : index
    %1 = vector.load %arg2[%c0_1, %c0_2] : memref<128x128xbf16, #tpu.memory_space<vmem>>, vector<128x128xbf16>
    %cst = arith.constant dense<0.000000e+00> : vector<512x128xf32>
    %2 = tpu.matmul %0, %1, %cst {dimension_numbers = #tpu.dot_dimension_numbers<[1], [0], [0], [1], [0, 0, 1, 1], [], []>} : vector<512x128xbf16>, vector<128x128xbf16>, vector<512x128xf32> -> vector<512x128xf32>
    %cst_3 = arith.constant dense<0.000000e+00> : vector<128xf32>
    %3 = vector.multi_reduction <add>, %2, %cst_3 [0] : vector<512x128xf32> to vector<128xf32>
    %4 = vector.shape_cast %3 : vector<128xf32> to vector<1x128xf32>
    %5 = arith.mulf %2, %2 : vector<512x128xf32>
    %cst_4 = arith.constant dense<0.000000e+00> : vector<128xf32>
    %6 = vector.multi_reduction <add>, %5, %cst_4 [0] : vector<512x128xf32> to vector<128xf32>
    %7 = vector.shape_cast %6 : vector<128xf32> to vector<1x128xf32>
    %8 = tpu.iota {dimensions = array<i32: 0>} : vector<8x128xi32>
    %c0_i32 = arith.constant 0 : i32
    %9 = vector.broadcast %c0_i32 : i32 to vector<8x128xi32>
    %10 = arith.cmpi eq, %8, %9 : vector<8x128xi32>
    %c1_i32 = arith.constant 1 : i32
    %11 = vector.broadcast %c1_i32 : i32 to vector<8x128xi32>
    %12 = arith.cmpi eq, %8, %11 : vector<8x128xi32>
    %cst_5 = arith.constant 0.000000e+00 : f32
    %13 = vector.shape_cast %7 : vector<1x128xf32> to vector<1x128xf32>
    %14 = vector.broadcast %13 : vector<1x128xf32> to vector<8x128xf32>
    %15 = vector.broadcast %cst_5 : f32 to vector<8x128xf32>
    %16 = arith.select %12, %14, %15 : vector<8x128xi1>, vector<8x128xf32>
    %17 = vector.shape_cast %4 : vector<1x128xf32> to vector<1x128xf32>
    %18 = vector.broadcast %17 : vector<1x128xf32> to vector<8x128xf32>
    %19 = arith.select %10, %18, %16 : vector<8x128xi1>, vector<8x128xf32>
    %c0_6 = arith.constant 0 : index
    %c0_7 = arith.constant 0 : index
    %20 = vector.load %arg3[%c0_6, %c0_7] : memref<8x128xf32, #tpu.memory_space<vmem>>, vector<8x128xf32>
    tpu.vector_store %arg3[%c0_6, %c0_7], %19 {strides = array<i32>} : memref<8x128xf32, #tpu.memory_space<vmem>>, vector<8x128xf32>,
    return
  }
  func.func @transform_0(%arg0: i32) -> (i32, i32) {
    %c0_i32 = arith.constant 0 : i32
    %c0_i32_0 = arith.constant 0 : i32
    return %arg0, %c0_i32 : i32, i32
  }
  func.func @transform_1(%arg0: i32) -> (i32, i32) {
    %c0_i32 = arith.constant 0 : i32
    %c0_i32_0 = arith.constant 0 : i32
    %c0_i32_1 = arith.constant 0 : i32
    return %c0_i32, %c0_i32_0 : i32, i32
  }
  func.func @transform_2(%arg0: i32) -> (i32, i32) {
    %c0_i32 = arith.constant 0 : i32
    %c0_i32_0 = arith.constant 0 : i32
    return %arg0, %c0_i32 : i32, i32
  }
}

module attributes {stable_mosaic.version = 11 : i64} {
  func.func @_conv_bn_lrelu_kernel(%arg0: i32, %arg1: memref<512x128xbf16, #tpu.memory_space<vmem>>, %arg2: memref<128x128xbf16, #tpu.memory_space<vmem>>, %arg3: memref<1x128xf32, #tpu.memory_space<vmem>>, %arg4: memref<1x128xf32, #tpu.memory_space<vmem>>, %arg5: memref<512x128xf32, #tpu.memory_space<vmem>>) attributes {dimension_semantics = [#tpu.dimension_semantics<parallel>], iteration_bounds = array<i64: 1>, scalar_prefetch = 0 : i64, scratch_operands = 0 : i64, tpu.core_type = #tpu.core_type<tc>, window_params = [{transform_indices = @transform_0, window_bounds = array<i64: 512, 128>}, {pipeline_mode = #tpu.pipeline_mode<synchronous>, transform_indices = @transform_1, window_bounds = array<i64: 128, 128>}, {pipeline_mode = #tpu.pipeline_mode<synchronous>, transform_indices = @transform_2, window_bounds = array<i64: 1, 128>}, {pipeline_mode = #tpu.pipeline_mode<synchronous>, transform_indices = @transform_3, window_bounds = array<i64: 1, 128>}, {transform_indices = @transform_4, window_bounds = array<i64: 512, 128>}]} {
    %c0 = arith.constant 0 : index
    %c0_0 = arith.constant 0 : index
    %0 = vector.load %arg1[%c0, %c0_0] : memref<512x128xbf16, #tpu.memory_space<vmem>>, vector<512x128xbf16>
    %c0_1 = arith.constant 0 : index
    %c0_2 = arith.constant 0 : index
    %1 = vector.load %arg2[%c0_1, %c0_2] : memref<128x128xbf16, #tpu.memory_space<vmem>>, vector<128x128xbf16>
    %cst = arith.constant dense<0.000000e+00> : vector<512x128xf32>
    %2 = tpu.matmul %0, %1, %cst {dimension_numbers = #tpu.dot_dimension_numbers<[1], [0], [0], [1], [0, 0, 1, 1], [], []>} : vector<512x128xbf16>, vector<128x128xbf16>, vector<512x128xf32> -> vector<512x128xf32>
    %c0_3 = arith.constant 0 : index
    %c0_4 = arith.constant 0 : index
    %3 = vector.load %arg3[%c0_3, %c0_4] : memref<1x128xf32, #tpu.memory_space<vmem>>, vector<1x128xf32>
    %4 = vector.broadcast %3 : vector<1x128xf32> to vector<512x128xf32>
    %5 = arith.mulf %2, %4 : vector<512x128xf32>
    %c0_5 = arith.constant 0 : index
    %c0_6 = arith.constant 0 : index
    %6 = vector.load %arg4[%c0_5, %c0_6] : memref<1x128xf32, #tpu.memory_space<vmem>>, vector<1x128xf32>
    %7 = vector.broadcast %6 : vector<1x128xf32> to vector<512x128xf32>
    %8 = arith.addf %5, %7 : vector<512x128xf32>
    %cst_7 = arith.constant 0.000000e+00 : f32
    %9 = vector.broadcast %cst_7 : f32 to vector<512x128xf32>
    %10 = arith.cmpf oge, %8, %9 : vector<512x128xf32>
    %cst_8 = arith.constant 2.000000e-01 : f32
    %11 = vector.broadcast %cst_8 : f32 to vector<512x128xf32>
    %12 = arith.mulf %11, %8 : vector<512x128xf32>
    %13 = arith.select %10, %8, %12 : vector<512x128xi1>, vector<512x128xf32>
    %c0_9 = arith.constant 0 : index
    %c0_10 = arith.constant 0 : index
    %14 = vector.load %arg5[%c0_9, %c0_10] : memref<512x128xf32, #tpu.memory_space<vmem>>, vector<512x128xf32>
    tpu.vector_store %arg5[%c0_9, %c0_10], %13 {strides = array<i32>} : memref<512x128xf32, #tpu.memory_space<vmem>>, vector<512x128xf32>,
    return
  }
  func.func @transform_0(%arg0: i32) -> (i32, i32) {
    %c0_i32 = arith.constant 0 : i32
    %c0_i32_0 = arith.constant 0 : i32
    return %arg0, %c0_i32 : i32, i32
  }
  func.func @transform_1(%arg0: i32) -> (i32, i32) {
    %c0_i32 = arith.constant 0 : i32
    %c0_i32_0 = arith.constant 0 : i32
    %c0_i32_1 = arith.constant 0 : i32
    return %c0_i32, %c0_i32_0 : i32, i32
  }
  func.func @transform_2(%arg0: i32) -> (i32, i32) {
    %c0_i32 = arith.constant 0 : i32
    %c0_i32_0 = arith.constant 0 : i32
    %c0_i32_1 = arith.constant 0 : i32
    return %c0_i32, %c0_i32_0 : i32, i32
  }
  func.func @transform_3(%arg0: i32) -> (i32, i32) {
    %c0_i32 = arith.constant 0 : i32
    %c0_i32_0 = arith.constant 0 : i32
    %c0_i32_1 = arith.constant 0 : i32
    return %c0_i32, %c0_i32_0 : i32, i32
  }
  func.func @transform_4(%arg0: i32) -> (i32, i32) {
    %c0_i32 = arith.constant 0 : i32
    %c0_i32_0 = arith.constant 0 : i32
    return %arg0, %c0_i32 : i32, i32
  }
}

</mosaic_0001>

<llo_original>
// kernel: conv_block_forward.2
$region0: #{conv_block_forward.2}
  #allocation0 [shape = 'u32[]', space=smem, size = 0x4, offset = 0x4, fixed_abs, tag = 'smem constant byte address 0x4 - core index']
  #allocation1 [shape = 'u32[144,128]{1,0:T(1,128)}', space=vmem, size = 0x12000, scoped, tag = 'internal scratch']
  %s0 = inlined_call_operand.vmem [shape: bf16[512,128], index: 0, kind: input, shape index: {}]
  %s1 = inlined_call_operand.vmem [shape: bf16[128,128], index: 1, kind: input, shape index: {}]
  %s2 = inlined_call_operand.vmem [shape: f32[8,128], index: 2, kind: output, shape index: {}]
  %s3 = sld [smem:[#allocation0]]
  $region18: #{conv_block_forward.2} parent=0
    _
  %s5 = ssub.s32 1, %s3
  %s6 = scalar_select 0, %s5, %s3
  // Predicated region
  $region2: #{conv_block_forward.2} parent=0 // pred_check
    _
  $region3: #{conv_block_forward.2} parent=0 // pred_check_branch
    %8 = sbr.rel (0) target = $region5
  $region4: #{conv_block_forward.2} parent=0 // pred_region
    _
  $region5: #{conv_block_forward.2} parent=0 // pred_fallthru
    _
  // Predicated region
  $region6: #{conv_block_forward.2} parent=0 // pred_check
    _
  $region7: #{conv_block_forward.2} parent=0 // pred_check_branch
    %10 = sbr.rel (0) target = $region9
  $region8: #{conv_block_forward.2} parent=0 // pred_region
    _
  $region9: #{conv_block_forward.2} parent=0 // pred_fallthru
    _
  %v12 = vld [vmem:[%s0] sm:$0xf]
  %v13 = vld [vmem:[%s0 + $0x4] sm:$0xf]
  %v14 = vld [vmem:[%s0 + $0x8] sm:$0xf]
  %v15 = vld [vmem:[%s0 + $0xc] sm:$0xf]
  %v16 = vld [vmem:[%s0 + $0x10] sm:$0xf]
  %v17 = vld [vmem:[%s0 + $0x14] sm:$0xf]
  %v18 = vld [vmem:[%s0 + $0x18] sm:$0xf]
  %v19 = vld [vmem:[%s0 + $0x1c] sm:$0xf]
  %v20 = vld [vmem:[%s0 + $0x20] sm:$0xf]
  %v21 = vld [vmem:[%s0 + $0x24] sm:$0xf]
  %v22 = vld [vmem:[%s0 + $0x28] sm:$0xf]
  %v23 = vld [vmem:[%s0 + $0x2c] sm:$0xf]
  %v24 = vld [vmem:[%s0 + $0x30] sm:$0xf]
  %v25 = vld [vmem:[%s0 + $0x34] sm:$0xf]
  %v26 = vld [vmem:[%s0 + $0x38] sm:$0xf]
  %v27 = vld [vmem:[%s0 + $0x3c] sm:$0xf]
  %v28 = vld [vmem:[%s0 + $0x40] sm:$0xf]
  %v29 = vld [vmem:[%s0 + $0x44] sm:$0xf]
  %v30 = vld [vmem:[%s0 + $0x48] sm:$0xf]
  %v31 = vld [vmem:[%s0 + $0x4c] sm:$0xf]
  %v32 = vld [vmem:[%s0 + $0x50] sm:$0xf]
  %v33 = vld [vmem:[%s0 + $0x54] sm:$0xf]
  %v34 = vld [vmem:[%s0 + $0x58] sm:$0xf]
  %v35 = vld [vmem:[%s0 + $0x5c] sm:$0xf]
  %v36 = vld [vmem:[%s0 + $0x60] sm:$0xf]
  %v37 = vld [vmem:[%s0 + $0x64] sm:$0xf]
  %v38 = vld [vmem:[%s0 + $0x68] sm:$0xf]
  %v39 = vld [vmem:[%s0 + $0x6c] sm:$0xf]
  %v40 = vld [vmem:[%s0 + $0x70] sm:$0xf]
  %v41 = vld [vmem:[%s0 + $0x74] sm:$0xf]
  %v42 = vld [vmem:[%s0 + $0x78] sm:$0xf]
  %v43 = vld [vmem:[%s0 + $0x7c] sm:$0xf]
  %v44 = vld [vmem:[%s0 + $0x80] sm:$0xf]
  %v45 = vld [vmem:[%s0 + $0x84] sm:$0xf]
  %v46 = vld [vmem:[%s0 + $0x88] sm:$0xf]
  %v47 = vld [vmem:[%s0 + $0x8c] sm:$0xf]
  %v48 = vld [vmem:[%s0 + $0x90] sm:$0xf]
  %v49 = vld [vmem:[%s0 + $0x94] sm:$0xf]
  %v50 = vld [vmem:[%s0 + $0x98] sm:$0xf]
  %v51 = vld [vmem:[%s0 + $0x9c] sm:$0xf]
  %v52 = vld [vmem:[%s0 + $0xa0] sm:$0xf]
  %v53 = vld [vmem:[%s0 + $0xa4] sm:$0xf]
  %v54 = vld [vmem:[%s0 + $0xa8] sm:$0xf]
  %v55 = vld [vmem:[%s0 + $0xac] sm:$0xf]
  %v56 = vld [vmem:[%s0 + $0xb0] sm:$0xf]
  %v57 = vld [vmem:[%s0 + $0xb4] sm:$0xf]
  %v58 = vld [vmem:[%s0 + $0xb8] sm:$0xf]
  %v59 = vld [vmem:[%s0 + $0xbc] sm:$0xf]
  %v60 = vld [vmem:[%s0 + $0xc0] sm:$0xf]
  %v61 = vld [vmem:[%s0 + $0xc4] sm:$0xf]
  %v62 = vld [vmem:[%s0 + $0xc8] sm:$0xf]
  %v63 = vld [vmem:[%s0 + $0xcc] sm:$0xf]
  %v64 = vld [vmem:[%s0 + $0xd0] sm:$0xf]
  %v65 = vld [vmem:[%s0 + $0xd4] sm:$0xf]
  %v66 = vld [vmem:[%s0 + $0xd8] sm:$0xf]
  %v67 = vld [vmem:[%s0 + $0xdc] sm:$0xf]
  %v68 = vld [vmem:[%s0 + $0xe0] sm:$0xf]
  %v69 = vld [vmem:[%s0 + $0xe4] sm:$0xf]
  %v70 = vld [vmem:[%s0 + $0xe8] sm:$0xf]
  %v71 = vld [vmem:[%s0 + $0xec] sm:$0xf]
  %v72 = vld [vmem:[%s0 + $0xf0] sm:$0xf]
  %v73 = vld [vmem:[%s0 + $0xf4] sm:$0xf]
  %v74 = vld [vmem:[%s0 + $0xf8] sm:$0xf]
  %v75 = vld [vmem:[%s0 + $0xfc] sm:$0xf]
  %v76 = vld [vmem:[%s1] sm:$0xf]
  %v77 = vld [vmem:[%s1 + $0x4] sm:$0xf]
  %v78 = vld [vmem:[%s1 + $0x8] sm:$0xf]
  %v79 = vld [vmem:[%s1 + $0xc] sm:$0xf]
  %v80 = vld [vmem:[%s1 + $0x10] sm:$0xf]
  %v81 = vld [vmem:[%s1 + $0x14] sm:$0xf]
  %v82 = vld [vmem:[%s1 + $0x18] sm:$0xf]
  %v83 = vld [vmem:[%s1 + $0x1c] sm:$0xf]
  %v84 = vld [vmem:[%s1 + $0x20] sm:$0xf]
  %v85 = vld [vmem:[%s1 + $0x24] sm:$0xf]
  %v86 = vld [vmem:[%s1 + $0x28] sm:$0xf]
  %v87 = vld [vmem:[%s1 + $0x2c] sm:$0xf]
  %v88 = vld [vmem:[%s1 + $0x30] sm:$0xf]
  %v89 = vld [vmem:[%s1 + $0x34] sm:$0xf]
  %v90 = vld [vmem:[%s1 + $0x38] sm:$0xf]
  %v91 = vld [vmem:[%s1 + $0x3c] sm:$0xf]
  %v156 = vunpack.c.l.b16 %v12
  %v157 = vunpack.c.l.b16 %v13
  %v158 = vunpack.c.l.b16 %v14
  %v159 = vunpack.c.l.b16 %v15
  %v160 = vunpack.c.l.b16 %v16
  %v161 = vunpack.c.l.b16 %v17
  %v162 = vunpack.c.l.b16 %v18
  %v163 = vunpack.c.l.b16 %v19
  %v164 = vunpack.c.l.b16 %v20
  %v165 = vunpack.c.l.b16 %v21
  %v166 = vunpack.c.l.b16 %v22
  %v167 = vunpack.c.l.b16 %v23
  %v168 = vunpack.c.l.b16 %v24
  %v169 = vunpack.c.l.b16 %v25
  %v170 = vunpack.c.l.b16 %v26
  %v171 = vunpack.c.l.b16 %v27
  %v172 = vunpack.c.l.b16 %v28
  %v173 = vunpack.c.l.b16 %v29
  %v174 = vunpack.c.l.b16 %v30
  %v175 = vunpack.c.l.b16 %v31
  %v176 = vunpack.c.l.b16 %v32
  %v177 = vunpack.c.l.b16 %v33
  %v178 = vunpack.c.l.b16 %v34
  %v179 = vunpack.c.l.b16 %v35
  %v180 = vunpack.c.l.b16 %v36
  %v181 = vunpack.c.l.b16 %v37
  %v182 = vunpack.c.l.b16 %v38
  %v183 = vunpack.c.l.b16 %v39
  %v184 = vunpack.c.l.b16 %v40
  %v185 = vunpack.c.l.b16 %v41
  %v186 = vunpack.c.l.b16 %v42
  %v187 = vunpack.c.l.b16 %v43
  %v188 = vunpack.c.l.b16 %v44
  %v189 = vunpack.c.l.b16 %v45
  %v190 = vunpack.c.l.b16 %v46
  %v191 = vunpack.c.l.b16 %v47
  %v192 = vunpack.c.l.b16 %v48
  %v193 = vunpack.c.l.b16 %v49
  %v194 = vunpack.c.l.b16 %v50
  %v195 = vunpack.c.l.b16 %v51
  %v196 = vunpack.c.l.b16 %v52
  %v197 = vunpack.c.l.b16 %v53
  %v198 = vunpack.c.l.b16 %v54
  %v199 = vunpack.c.l.b16 %v55
  %v200 = vunpack.c.l.b16 %v56
  %v201 = vunpack.c.l.b16 %v57
  %v202 = vunpack.c.l.b16 %v58
  %v203 = vunpack.c.l.b16 %v59
  %v204 = vunpack.c.l.b16 %v60
  %v205 = vunpack.c.l.b16 %v61
  %v206 = vunpack.c.l.b16 %v62
  %v207 = vunpack.c.l.b16 %v63
  %v208 = vunpack.c.l.b16 %v64
  %v209 = vunpack.c.l.b16 %v65
  %v210 = vunpack.c.l.b16 %v66
  %v211 = vunpack.c.l.b16 %v67
  %v212 = vunpack.c.l.b16 %v68
  %v213 = vunpack.c.l.b16 %v69
  %v214 = vunpack.c.l.b16 %v70
  %v215 = vunpack.c.l.b16 %v71
  %v216 = vunpack.c.l.b16 %v72
  %v217 = vunpack.c.l.b16 %v73
  %v218 = vunpack.c.l.b16 %v74
  %v219 = vunpack.c.l.b16 %v75
  %v220 = vpack.c.b16 %v157, %v156
  %v221 = vpack.c.b16 %v159, %v158
  %v222 = vpack.c.b16 %v161, %v160
  %v223 = vpack.c.b16 %v163, %v162
  %v224 = vpack.c.b16 %v165, %v164
  %v225 = vpack.c.b16 %v167, %v166
  %v226 = vpack.c.b16 %v169, %v168
  %v227 = vpack.c.b16 %v171, %v170
  %v228 = vpack.c.b16 %v173, %v172
  %v229 = vpack.c.b16 %v175, %v174
  %v230 = vpack.c.b16 %v177, %v176
  %v231 = vpack.c.b16 %v179, %v178
  %v232 = vpack.c.b16 %v181, %v180
  %v233 = vpack.c.b16 %v183, %v182
  %v234 = vpack.c.b16 %v185, %v184
  %v235 = vpack.c.b16 %v187, %v186
  %v236 = vpack.c.b16 %v189, %v188
  %v237 = vpack.c.b16 %v191, %v190
  %v238 = vpack.c.b16 %v193, %v192
  %v239 = vpack.c.b16 %v195, %v194
  %v240 = vpack.c.b16 %v197, %v196
  %v241 = vpack.c.b16 %v199, %v198
  %v242 = vpack.c.b16 %v201, %v200
  %v243 = vpack.c.b16 %v203, %v202
  %v244 = vpack.c.b16 %v205, %v204
  %v245 = vpack.c.b16 %v207, %v206
  %v246 = vpack.c.b16 %v209, %v208
  %v247 = vpack.c.b16 %v211, %v210
  %v248 = vpack.c.b16 %v213, %v212
  %v249 = vpack.c.b16 %v215, %v214
  %v250 = vpack.c.b16 %v217, %v216
  %v251 = vpack.c.b16 %v219, %v218
  %v300 = vunpack.c.l.b16 %v76
  %v301 = vunpack.c.l.b16 %v77
  %v302 = vunpack.c.l.b16 %v78
  %v303 = vunpack.c.l.b16 %v79
  %v304 = vunpack.c.l.b16 %v80
  %v305 = vunpack.c.l.b16 %v81
  %v306 = vunpack.c.l.b16 %v82
  %v307 = vunpack.c.l.b16 %v83
  %v308 = vunpack.c.l.b16 %v84
  %v309 = vunpack.c.l.b16 %v85
  %v310 = vunpack.c.l.b16 %v86
  %v311 = vunpack.c.l.b16 %v87
  %v312 = vunpack.c.l.b16 %v88
  %v313 = vunpack.c.l.b16 %v89
  %v314 = vunpack.c.l.b16 %v90
  %v315 = vunpack.c.l.b16 %v91
  %v316 = vpack.c.b16 %v301, %v300
  %v317 = vpack.c.b16 %v303, %v302
  %v318 = vpack.c.b16 %v305, %v304
  %v319 = vpack.c.b16 %v307, %v306
  %v320 = vpack.c.b16 %v309, %v308
  %v321 = vpack.c.b16 %v311, %v310
  %v322 = vpack.c.b16 %v313, %v312
  %v323 = vpack.c.b16 %v315, %v314
  %332 = vmatprep.subr.bf16.mxu0 0
  %333 = vmatpush1.bf16.msra.mxu0 %v323
  %334 = vmatprep.subr.bf16.mxu0 0
  %335 = vmatpush1.bf16.msra.mxu0 %v322
  %336 = vmatprep.subr.bf16.mxu0 0
  %337 = vmatpush1.bf16.msra.mxu0 %v321
  %338 = vmatprep.subr.bf16.mxu0 0
  %339 = vmatpush1.bf16.msra.mxu0 %v320
  %340 = vmatprep.subr.bf16.mxu0 0
  %341 = vmatpush1.bf16.msra.mxu0 %v319
  %342 = vmatprep.subr.bf16.mxu0 0
  %343 = vmatpush1.bf16.msra.mxu0 %v318
  %344 = vmatprep.subr.bf16.mxu0 0
  %345 = vmatpush1.bf16.msra.mxu0 %v317
  %346 = vmatprep.subr.bf16.mxu0 0
  %347 = vmatpush1.bf16.msra.mxu0 %v316
  %348 = vmatprep.subr.bf16.mxu0 0
  %349 = vmatpush2.bf16.msra.mxu0 0
  %350 = vmatprep.subr.bf16.mxu0 0
  %351 = vmatpush2.bf16.msra.mxu0 0
  %352 = vmatprep.subr.bf16.mxu0 0
  %353 = vmatpush2.bf16.msra.mxu0 0
  %354 = vmatprep.subr.bf16.mxu0 0
  %355 = vmatpush2.bf16.msra.mxu0 0
  %356 = vmatprep.subr.bf16.mxu0 0
  %357 = vmatpush2.bf16.msra.mxu0 0
  %358 = vmatprep.subr.bf16.mxu0 0
  %359 = vmatpush2.bf16.msra.mxu0 0
  %360 = vmatprep.subr.bf16.mxu0 0
  %361 = vmatpush2.bf16.msra.mxu0 0
  %362 = vmatprep.subr.bf16.mxu0 0
  %363 = vmatpush2.bf16.msra.mxu0 0
  %364 = vmatprep.mubr.bf16.mxu0 0
  %365 = vmatmul.mubr.bf16.gmra.mxu0 %v220
  %v366 = vpop.f32.mrf.mxu0
  %v367 = vadd.f32 0.0, %v366
  %v368 = vpop.f32.mrf.mxu0
  %v369 = vpop.f32.mrf.mxu0
  %v370 = vadd.f32 0.0, %v369
  %v371 = vpop.f32.mrf.mxu0
  %372 = vmatprep.mubr.bf16.mxu0 0
  %373 = vmatmul.mubr.bf16.gmra.mxu0 %v221
  %v374 = vpop.f32.mrf.mxu0
  %v375 = vadd.f32 0.0, %v374
  %v376 = vpop.f32.mrf.mxu0
  %v377 = vpop.f32.mrf.mxu0
  %v378 = vadd.f32 0.0, %v377
  %v379 = vpop.f32.mrf.mxu0
  %380 = vmatprep.mubr.bf16.mxu0 0
  %381 = vmatmul.mubr.bf16.gmra.mxu0 %v222
  %v382 = vpop.f32.mrf.mxu0
  %v383 = vadd.f32 0.0, %v382
  %v384 = vpop.f32.mrf.mxu0
  %v385 = vpop.f32.mrf.mxu0
  %v386 = vadd.f32 0.0, %v385
  %v387 = vpop.f32.mrf.mxu0
  %388 = vmatprep.mubr.bf16.mxu0 0
  %389 = vmatmul.mubr.bf16.gmra.mxu0 %v223
  %v390 = vpop.f32.mrf.mxu0
  %v391 = vadd.f32 0.0, %v390
  %v392 = vpop.f32.mrf.mxu0
  %v393 = vpop.f32.mrf.mxu0
  %v394 = vadd.f32 0.0, %v393
  %v395 = vpop.f32.mrf.mxu0
  %396 = vmatprep.mubr.bf16.mxu0 0
  %397 = vmatmul.mubr.bf16.gmra.mxu0 %v224
  %v398 = vpop.f32.mrf.mxu0
  %v399 = vadd.f32 0.0, %v398
  %v400 = vpop.f32.mrf.mxu0
  %v401 = vpop.f32.mrf.mxu0
  %v402 = vadd.f32 0.0, %v401
  %v403 = vpop.f32.mrf.mxu0
  %404 = vmatprep.mubr.bf16.mxu0 0
  %405 = vmatmul.mubr.bf16.gmra.mxu0 %v225
  %v406 = vpop.f32.mrf.mxu0
  %v407 = vadd.f32 0.0, %v406
  %v408 = vpop.f32.mrf.mxu0
  %v409 = vpop.f32.mrf.mxu0
  %v410 = vadd.f32 0.0, %v409
  %v411 = vpop.f32.mrf.mxu0
  %412 = vmatprep.mubr.bf16.mxu0 0
  %413 = vmatmul.mubr.bf16.gmra.mxu0 %v226
  %v414 = vpop.f32.mrf.mxu0
  %v415 = vadd.f32 0.0, %v414
  %v416 = vpop.f32.mrf.mxu0
  %v417 = vpop.f32.mrf.mxu0
  %v418 = vadd.f32 0.0, %v417
  %v419 = vpop.f32.mrf.mxu0
  %420 = vmatprep.mubr.bf16.mxu0 0
  %421 = vmatmul.mubr.bf16.gmra.mxu0 %v227
  %v422 = vpop.f32.mrf.mxu0
  %v423 = vadd.f32 0.0, %v422
  %v424 = vpop.f32.mrf.mxu0
  %v425 = vpop.f32.mrf.mxu0
  %v426 = vadd.f32 0.0, %v425
  %v427 = vpop.f32.mrf.mxu0
  %428 = vmatprep.mubr.bf16.mxu0 0
  %429 = vmatmul.mubr.bf16.gmra.mxu0 %v228
  %v430 = vpop.f32.mrf.mxu0
  %v431 = vadd.f32 0.0, %v430
  %v432 = vpop.f32.mrf.mxu0
  %v433 = vpop.f32.mrf.mxu0
  %v434 = vadd.f32 0.0, %v433
  %v435 = vpop.f32.mrf.mxu0
  %436 = vmatprep.mubr.bf16.mxu0 0
  %437 = vmatmul.mubr.bf16.gmra.mxu0 %v229
  %v438 = vpop.f32.mrf.mxu0
  %v439 = vadd.f32 0.0, %v438
  %v440 = vpop.f32.mrf.mxu0
  %v441 = vpop.f32.mrf.mxu0
  %v442 = vadd.f32 0.0, %v441
  %v443 = vpop.f32.mrf.mxu0
  %444 = vmatprep.mubr.bf16.mxu0 0
  %445 = vmatmul.mubr.bf16.gmra.mxu0 %v230
  %v446 = vpop.f32.mrf.mxu0
  %v447 = vadd.f32 0.0, %v446
  %v448 = vpop.f32.mrf.mxu0
  %v449 = vpop.f32.mrf.mxu0
  %v450 = vadd.f32 0.0, %v449
  %v451 = vpop.f32.mrf.mxu0
  %452 = vmatprep.mubr.bf16.mxu0 0
  %453 = vmatmul.mubr.bf16.gmra.mxu0 %v231
  %v454 = vpop.f32.mrf.mxu0
  %v455 = vadd.f32 0.0, %v454
  %v456 = vpop.f32.mrf.mxu0
  %v457 = vpop.f32.mrf.mxu0
  %v458 = vadd.f32 0.0, %v457
  %v459 = vpop.f32.mrf.mxu0
  %460 = vmatprep.mubr.bf16.mxu0 0
  %461 = vmatmul.mubr.bf16.gmra.mxu0 %v232
  %v462 = vpop.f32.mrf.mxu0
  %v463 = vadd.f32 0.0, %v462
  %v464 = vpop.f32.mrf.mxu0
  %v465 = vpop.f32.mrf.mxu0
  %v466 = vadd.f32 0.0, %v465
  %v467 = vpop.f32.mrf.mxu0
  %468 = vmatprep.mubr.bf16.mxu0 0
  %469 = vmatmul.mubr.bf16.gmra.mxu0 %v233
  %v470 = vpop.f32.mrf.mxu0
  %v471 = vadd.f32 0.0, %v470
  %v472 = vpop.f32.mrf.mxu0
  %v473 = vpop.f32.mrf.mxu0
  %v474 = vadd.f32 0.0, %v473
  %v475 = vpop.f32.mrf.mxu0
  %476 = vmatprep.mubr.bf16.mxu0 0
  %477 = vmatmul.mubr.bf16.gmra.mxu0 %v234
  %v478 = vpop.f32.mrf.mxu0
  %v479 = vadd.f32 0.0, %v478
  %v480 = vpop.f32.mrf.mxu0
  %v481 = vpop.f32.mrf.mxu0
  %v482 = vadd.f32 0.0, %v481
  %v483 = vpop.f32.mrf.mxu0
  %484 = vmatprep.mubr.bf16.mxu0 0
  %485 = vmatmul.mubr.bf16.gmra.mxu0 %v235
  %v486 = vpop.f32.mrf.mxu0
  %v487 = vadd.f32 0.0, %v486
  %v488 = vpop.f32.mrf.mxu0
  %v489 = vpop.f32.mrf.mxu0
  %v490 = vadd.f32 0.0, %v489
  %v491 = vpop.f32.mrf.mxu0
  %492 = vmatprep.mubr.bf16.mxu0 0
  %493 = vmatmul.mubr.bf16.gmra.mxu0 %v236
  %v494 = vpop.f32.mrf.mxu0
  %v495 = vadd.f32 0.0, %v494
  %v496 = vpop.f32.mrf.mxu0
  %v497 = vpop.f32.mrf.mxu0
  %v498 = vadd.f32 0.0, %v497
  %v499 = vpop.f32.mrf.mxu0
  %500 = vmatprep.mubr.bf16.mxu0 0
  %501 = vmatmul.mubr.bf16.gmra.mxu0 %v237
  %v502 = vpop.f32.mrf.mxu0
  %v503 = vadd.f32 0.0, %v502
  %v504 = vpop.f32.mrf.mxu0
  %v505 = vpop.f32.mrf.mxu0
  %v506 = vadd.f32 0.0, %v505
  %v507 = vpop.f32.mrf.mxu0
  %508 = vmatprep.mubr.bf16.mxu0 0
  %509 = vmatmul.mubr.bf16.gmra.mxu0 %v238
  %v510 = vpop.f32.mrf.mxu0
  %v511 = vadd.f32 0.0, %v510
  %v512 = vpop.f32.mrf.mxu0
  %v513 = vpop.f32.mrf.mxu0
  %v514 = vadd.f32 0.0, %v513
  %v515 = vpop.f32.mrf.mxu0
  %516 = vmatprep.mubr.bf16.mxu0 0
  %517 = vmatmul.mubr.bf16.gmra.mxu0 %v239
  %v518 = vpop.f32.mrf.mxu0
  %v519 = vadd.f32 0.0, %v518
  %v520 = vpop.f32.mrf.mxu0
  %v521 = vpop.f32.mrf.mxu0
  %v522 = vadd.f32 0.0, %v521
  %v523 = vpop.f32.mrf.mxu0
  %524 = vmatprep.mubr.bf16.mxu0 0
  %525 = vmatmul.mubr.bf16.gmra.mxu0 %v240
  %v526 = vpop.f32.mrf.mxu0
  %v527 = vadd.f32 0.0, %v526
  %v528 = vpop.f32.mrf.mxu0
  %v529 = vpop.f32.mrf.mxu0
  %v530 = vadd.f32 0.0, %v529
  %v531 = vpop.f32.mrf.mxu0
  %532 = vmatprep.mubr.bf16.mxu0 0
  %533 = vmatmul.mubr.bf16.gmra.mxu0 %v241
  %v534 = vpop.f32.mrf.mxu0
  %v535 = vadd.f32 0.0, %v534
  %v536 = vpop.f32.mrf.mxu0
  %v537 = vpop.f32.mrf.mxu0
  %v538 = vadd.f32 0.0, %v537
  %v539 = vpop.f32.mrf.mxu0
  %540 = vmatprep.mubr.bf16.mxu0 0
  %541 = vmatmul.mubr.bf16.gmra.mxu0 %v242
  %v542 = vpop.f32.mrf.mxu0
  %v543 = vadd.f32 0.0, %v542
  %v544 = vpop.f32.mrf.mxu0
  %v545 = vpop.f32.mrf.mxu0
  %v546 = vadd.f32 0.0, %v545
  %v547 = vpop.f32.mrf.mxu0
  %548 = vmatprep.mubr.bf16.mxu0 0
  %549 = vmatmul.mubr.bf16.gmra.mxu0 %v243
  %v550 = vpop.f32.mrf.mxu0
  %v551 = vadd.f32 0.0, %v550
  %v552 = vpop.f32.mrf.mxu0
  %v553 = vpop.f32.mrf.mxu0
  %v554 = vadd.f32 0.0, %v553
  %v555 = vpop.f32.mrf.mxu0
  %556 = vmatprep.mubr.bf16.mxu0 0
  %557 = vmatmul.mubr.bf16.gmra.mxu0 %v244
  %v558 = vpop.f32.mrf.mxu0
  %v559 = vadd.f32 0.0, %v558
  %v560 = vpop.f32.mrf.mxu0
  %v561 = vpop.f32.mrf.mxu0
  %v562 = vadd.f32 0.0, %v561
  %v563 = vpop.f32.mrf.mxu0
  %564 = vmatprep.mubr.bf16.mxu0 0
  %565 = vmatmul.mubr.bf16.gmra.mxu0 %v245
  %v566 = vpop.f32.mrf.mxu0
  %v567 = vadd.f32 0.0, %v566
  %v568 = vpop.f32.mrf.mxu0
  %v569 = vpop.f32.mrf.mxu0
  %v570 = vadd.f32 0.0, %v569
  %v571 = vpop.f32.mrf.mxu0
  %572 = vmatprep.mubr.bf16.mxu0 0
  %573 = vmatmul.mubr.bf16.gmra.mxu0 %v246
  %v574 = vpop.f32.mrf.mxu0
  %v575 = vadd.f32 0.0, %v574
  %v576 = vpop.f32.mrf.mxu0
  %v577 = vpop.f32.mrf.mxu0
  %v578 = vadd.f32 0.0, %v577
  %v579 = vpop.f32.mrf.mxu0
  %580 = vmatprep.mubr.bf16.mxu0 0
  %581 = vmatmul.mubr.bf16.gmra.mxu0 %v247
  %v582 = vpop.f32.mrf.mxu0
  %v583 = vadd.f32 0.0, %v582
  %v584 = vpop.f32.mrf.mxu0
  %v585 = vpop.f32.mrf.mxu0
  %v586 = vadd.f32 0.0, %v585
  %v587 = vpop.f32.mrf.mxu0
  %588 = vmatprep.mubr.bf16.mxu0 0
  %589 = vmatmul.mubr.bf16.gmra.mxu0 %v248
  %v590 = vpop.f32.mrf.mxu0
  %v591 = vadd.f32 0.0, %v590
  %v592 = vpop.f32.mrf.mxu0
  %v593 = vpop.f32.mrf.mxu0
  %v594 = vadd.f32 0.0, %v593
  %v595 = vpop.f32.mrf.mxu0
  %596 = vmatprep.mubr.bf16.mxu0 0
  %597 = vmatmul.mubr.bf16.gmra.mxu0 %v249
  %v598 = vpop.f32.mrf.mxu0
  %v599 = vadd.f32 0.0, %v598
  %v600 = vpop.f32.mrf.mxu0
  %v601 = vpop.f32.mrf.mxu0
  %v602 = vadd.f32 0.0, %v601
  %v603 = vpop.f32.mrf.mxu0
  %604 = vmatprep.mubr.bf16.mxu0 0
  %605 = vmatmul.mubr.bf16.gmra.mxu0 %v250
  %v606 = vpop.f32.mrf.mxu0
  %v607 = vadd.f32 0.0, %v606
  %v608 = vpop.f32.mrf.mxu0
  %v609 = vpop.f32.mrf.mxu0
  %v610 = vadd.f32 0.0, %v609
  %v611 = vpop.f32.mrf.mxu0
  %612 = vmatprep.mubr.bf16.mxu0 0
  %613 = vmatmul.mubr.bf16.gmra.mxu0 %v251
  %v614 = vpop.f32.mrf.mxu0
  %v615 = vadd.f32 0.0, %v614
  %v616 = vpop.f32.mrf.mxu0
  %v617 = vpop.f32.mrf.mxu0
  %v618 = vadd.f32 0.0, %v617
  %v619 = vpop.f32.mrf.mxu0
  %620 = vdwg.mxu0
  %v621 = vadd.f32 %v367, %v370
  %v622 = vadd.f32 %v621, %v375
  %v623 = vadd.f32 %v622, %v378
  %v624 = vadd.f32 %v623, %v383
  %v625 = vadd.f32 %v624, %v386
  %v626 = vadd.f32 %v625, %v391
  %v627 = vadd.f32 %v626, %v394
  %v628 = vadd.f32 %v627, %v399
  %v629 = vadd.f32 %v628, %v402
  %v630 = vadd.f32 %v629, %v407
  %v631 = vadd.f32 %v630, %v410
  %v632 = vadd.f32 %v631, %v415
  %v633 = vadd.f32 %v632, %v418
  %v634 = vadd.f32 %v633, %v423
  %v635 = vadd.f32 %v634, %v426
  %v636 = vadd.f32 %v635, %v431
  %v637 = vadd.f32 %v636, %v434
  %v638 = vadd.f32 %v637, %v439
  %v639 = vadd.f32 %v638, %v442
  %v640 = vadd.f32 %v639, %v447
  %v641 = vadd.f32 %v640, %v450
  %v642 = vadd.f32 %v641, %v455
  %v643 = vadd.f32 %v642, %v458
  %v644 = vadd.f32 %v643, %v463
  %v645 = vadd.f32 %v644, %v466
  %v646 = vadd.f32 %v645, %v471
  %v647 = vadd.f32 %v646, %v474
  %v648 = vadd.f32 %v647, %v479
  %v649 = vadd.f32 %v648, %v482
  %v650 = vadd.f32 %v649, %v487
  %v651 = vadd.f32 %v650, %v490
  %v652 = vadd.f32 %v651, %v495
  %v653 = vadd.f32 %v652, %v498
  %v654 = vadd.f32 %v653, %v503
  %v655 = vadd.f32 %v654, %v506
  %v656 = vadd.f32 %v655, %v511
  %v657 = vadd.f32 %v656, %v514
  %v658 = vadd.f32 %v657, %v519
  %v659 = vadd.f32 %v658, %v522
  %v660 = vadd.f32 %v659, %v527
  %v661 = vadd.f32 %v660, %v530
  %v662 = vadd.f32 %v661, %v535
  %v663 = vadd.f32 %v662, %v538
  %v664 = vadd.f32 %v663, %v543
  %v665 = vadd.f32 %v664, %v546
  %v666 = vadd.f32 %v665, %v551
  %v667 = vadd.f32 %v666, %v554
  %v668 = vadd.f32 %v667, %v559
  %v669 = vadd.f32 %v668, %v562
  %v670 = vadd.f32 %v669, %v567
  %v671 = vadd.f32 %v670, %v570
  %v672 = vadd.f32 %v671, %v575
  %v673 = vadd.f32 %v672, %v578
  %v674 = vadd.f32 %v673, %v583
  %v675 = vadd.f32 %v674, %v586
  %v676 = vadd.f32 %v675, %v591
  %v677 = vadd.f32 %v676, %v594
  %v678 = vadd.f32 %v677, %v599
  %v679 = vadd.f32 %v678, %v602
  %v680 = vadd.f32 %v679, %v607
  %v681 = vadd.f32 %v680, %v610
  %v682 = vadd.f32 %v681, %v615
  %v683 = vadd.f32 %v682, %v618
  %v684 = vrot.slane %v683, 4
  %v685 = vadd.f32 %v683, %v684
  %v686 = vrot.slane %v685, 2
  %v687 = vadd.f32 %v685, %v686
  %v688 = vrot.slane %v687, 1
  %v689 = vadd.f32 %v687, %v688
  %v690 = vmul.f32 %v367, %v367
  %v691 = vmul.f32 %v370, %v370
  %v692 = vmul.f32 %v375, %v375
  %v693 = vmul.f32 %v378, %v378
  %v694 = vmul.f32 %v383, %v383
  %v695 = vmul.f32 %v386, %v386
  %v696 = vmul.f32 %v391, %v391
  %v697 = vmul.f32 %v394, %v394
  %v698 = vmul.f32 %v399, %v399
  %v699 = vmul.f32 %v402, %v402
  %v700 = vmul.f32 %v407, %v407
  %v701 = vmul.f32 %v410, %v410
  %v702 = vmul.f32 %v415, %v415
  %v703 = vmul.f32 %v418, %v418
  %v704 = vmul.f32 %v423, %v423
  %v705 = vmul.f32 %v426, %v426
  %v706 = vmul.f32 %v431, %v431
  %v707 = vmul.f32 %v434, %v434
  %v708 = vmul.f32 %v439, %v439
  %v709 = vmul.f32 %v442, %v442
  %v710 = vmul.f32 %v447, %v447
  %v711 = vmul.f32 %v450, %v450
  %v712 = vmul.f32 %v455, %v455
  %v713 = vmul.f32 %v458, %v458
  %v714 = vmul.f32 %v463, %v463
  %v715 = vmul.f32 %v466, %v466
  %v716 = vmul.f32 %v471, %v471
  %v717 = vmul.f32 %v474, %v474
  %v718 = vmul.f32 %v479, %v479
  %v719 = vmul.f32 %v482, %v482
  %v720 = vmul.f32 %v487, %v487
  %v721 = vmul.f32 %v490, %v490
  %v722 = vmul.f32 %v495, %v495
  %v723 = vmul.f32 %v498, %v498
  %v724 = vmul.f32 %v503, %v503
  %v725 = vmul.f32 %v506, %v506
  %v726 = vmul.f32 %v511, %v511
  %v727 = vmul.f32 %v514, %v514
  %v728 = vmul.f32 %v519, %v519
  %v729 = vmul.f32 %v522, %v522
  %v730 = vmul.f32 %v527, %v527
  %v731 = vmul.f32 %v530, %v530
  %v732 = vmul.f32 %v535, %v535
  %v733 = vmul.f32 %v538, %v538
  %v734 = vmul.f32 %v543, %v543
  %v735 = vmul.f32 %v546, %v546
  %v736 = vmul.f32 %v551, %v551
  %v737 = vmul.f32 %v554, %v554
  %v738 = vmul.f32 %v559, %v559
  %v739 = vmul.f32 %v562, %v562
  %v740 = vmul.f32 %v567, %v567
  %v741 = vmul.f32 %v570, %v570
  %v742 = vmul.f32 %v575, %v575
  %v743 = vmul.f32 %v578, %v578
  %v744 = vmul.f32 %v583, %v583
  %v745 = vmul.f32 %v586, %v586
  %v746 = vmul.f32 %v591, %v591
  %v747 = vmul.f32 %v594, %v594
  %v748 = vmul.f32 %v599, %v599
  %v749 = vmul.f32 %v602, %v602
  %v750 = vmul.f32 %v607, %v607
  %v751 = vmul.f32 %v610, %v610
  %v752 = vmul.f32 %v615, %v615
  %v753 = vmul.f32 %v618, %v618
  %v754 = vadd.f32 %v690, %v691
  %v755 = vadd.f32 %v754, %v692
  %v756 = vadd.f32 %v755, %v693
  %v757 = vadd.f32 %v756, %v694
  %v758 = vadd.f32 %v757, %v695
  %v759 = vadd.f32 %v758, %v696
  %v760 = vadd.f32 %v759, %v697
  %v761 = vadd.f32 %v760, %v698
  %v762 = vadd.f32 %v761, %v699
  %v763 = vadd.f32 %v762, %v700
  %v764 = vadd.f32 %v763, %v701
  %v765 = vadd.f32 %v764, %v702
  %v766 = vadd.f32 %v765, %v703
  %v767 = vadd.f32 %v766, %v704
  %v768 = vadd.f32 %v767, %v705
  %v769 = vadd.f32 %v768, %v706
  %v770 = vadd.f32 %v769, %v707
  %v771 = vadd.f32 %v770, %v708
  %v772 = vadd.f32 %v771, %v709
  %v773 = vadd.f32 %v772, %v710
  %v774 = vadd.f32 %v773, %v711
  %v775 = vadd.f32 %v774, %v712
  %v776 = vadd.f32 %v775, %v713
  %v777 = vadd.f32 %v776, %v714
  %v778 = vadd.f32 %v777, %v715
  %v779 = vadd.f32 %v778, %v716
  %v780 = vadd.f32 %v779, %v717
  %v781 = vadd.f32 %v780, %v718
  %v782 = vadd.f32 %v781, %v719
  %v783 = vadd.f32 %v782, %v720
  %v784 = vadd.f32 %v783, %v721
  %v785 = vadd.f32 %v784, %v722
  %v786 = vadd.f32 %v785, %v723
  %v787 = vadd.f32 %v786, %v724
  %v788 = vadd.f32 %v787, %v725
  %v789 = vadd.f32 %v788, %v726
  %v790 = vadd.f32 %v789, %v727
  %v791 = vadd.f32 %v790, %v728
  %v792 = vadd.f32 %v791, %v729
  %v793 = vadd.f32 %v792, %v730
  %v794 = vadd.f32 %v793, %v731
  %v795 = vadd.f32 %v794, %v732
  %v796 = vadd.f32 %v795, %v733
  %v797 = vadd.f32 %v796, %v734
  %v798 = vadd.f32 %v797, %v735
  %v799 = vadd.f32 %v798, %v736
  %v800 = vadd.f32 %v799, %v737
  %v801 = vadd.f32 %v800, %v738
  %v802 = vadd.f32 %v801, %v739
  %v803 = vadd.f32 %v802, %v740
  %v804 = vadd.f32 %v803, %v741
  %v805 = vadd.f32 %v804, %v742
  %v806 = vadd.f32 %v805, %v743
  %v807 = vadd.f32 %v806, %v744
  %v808 = vadd.f32 %v807, %v745
  %v809 = vadd.f32 %v808, %v746
  %v810 = vadd.f32 %v809, %v747
  %v811 = vadd.f32 %v810, %v748
  %v812 = vadd.f32 %v811, %v749
  %v813 = vadd.f32 %v812, %v750
  %v814 = vadd.f32 %v813, %v751
  %v815 = vadd.f32 %v814, %v752
  %v816 = vadd.f32 %v815, %v753
  %v817 = vrot.slane %v816, 4
  %v818 = vadd.f32 %v816, %v817
  %v819 = vrot.slane %v818, 2
  %v820 = vadd.f32 %v818, %v819
  %v821 = vrot.slane %v820, 1
  %v822 = vadd.f32 %v820, %v821
  %v823 = vlaneseq
  %v824 = vshrl.u32 %v823, 7
  %vm825 = vcmp.eq.s32.totalorder %v824, 0
  %vm826 = vcmp.eq.s32.totalorder %v824, 1
  %v827 = vsel %vm826, %v822, 0.0
  %v828 = vsel %vm825, %v689, %v827
  %829 = vst [vmem:[%s2] sm:$0xff] %v828
  // Predicated region
  $region10: #{conv_block_forward.2} parent=0 // pred_check
    _
  $region11: #{conv_block_forward.2} parent=0 // pred_check_branch
    %831 = sbr.rel (0) target = $region13
  $region12: #{conv_block_forward.2} parent=0 // pred_region
    _
  $region13: #{conv_block_forward.2} parent=0 // pred_fallthru
    _
  // Predicated region
  $region14: #{conv_block_forward.2} parent=0 // pred_check
    _
  $region15: #{conv_block_forward.2} parent=0 // pred_check_branch
    %833 = sbr.rel (0) target = $region17
  $region16: #{conv_block_forward.2} parent=0 // pred_region
    _
  $region17: #{conv_block_forward.2} parent=0 // pred_fallthru
    _

// kernel: conv_block_forward.3
$region0: #{conv_block_forward.3}
  #allocation0 [shape = 'u32[]', space=smem, size = 0x4, offset = 0x4, fixed_abs, tag = 'smem constant byte address 0x4 - core index']
  #allocation1 [shape = 'u32[144,128]{1,0:T(1,128)}', space=vmem, size = 0x12000, scoped, tag = 'internal scratch']
  %s0 = inlined_call_operand.vmem [shape: bf16[512,128], index: 0, kind: input, shape index: {}]
  %s1 = inlined_call_operand.vmem [shape: bf16[128,128], index: 1, kind: input, shape index: {}]
  %s2 = inlined_call_operand.vmem [shape: f32[1,128], index: 2, kind: input, shape index: {}]
  %s3 = inlined_call_operand.vmem [shape: f32[1,128], index: 3, kind: input, shape index: {}]
  %s4 = inlined_call_operand.vmem [shape: f32[512,128], index: 4, kind: output, shape index: {}]
  %s5 = sld [smem:[#allocation0]]
  $region26: #{conv_block_forward.3} parent=0
    _
  %s7 = ssub.s32 1, %s5
  %s8 = scalar_select 0, %s7, %s5
  // Predicated region
  $region2: #{conv_block_forward.3} parent=0 // pred_check
    _
  $region3: #{conv_block_forward.3} parent=0 // pred_check_branch
    %10 = sbr.rel (0) target = $region5
  $region4: #{conv_block_forward.3} parent=0 // pred_region
    _
  $region5: #{conv_block_forward.3} parent=0 // pred_fallthru
    _
  // Predicated region
  $region6: #{conv_block_forward.3} parent=0 // pred_check
    _
  $region7: #{conv_block_forward.3} parent=0 // pred_check_branch
    %12 = sbr.rel (0) target = $region9
  $region8: #{conv_block_forward.3} parent=0 // pred_region
    _
  $region9: #{conv_block_forward.3} parent=0 // pred_fallthru
    _
  // Predicated region
  $region10: #{conv_block_forward.3} parent=0 // pred_check
    _
  $region11: #{conv_block_forward.3} parent=0 // pred_check_branch
    %14 = sbr.rel (0) target = $region13
  $region12: #{conv_block_forward.3} parent=0 // pred_region
    _
  $region13: #{conv_block_forward.3} parent=0 // pred_fallthru
    _
  // Predicated region
  $region14: #{conv_block_forward.3} parent=0 // pred_check
    _
  $region15: #{conv_block_forward.3} parent=0 // pred_check_branch
    %16 = sbr.rel (0) target = $region17
  $region16: #{conv_block_forward.3} parent=0 // pred_region
    _
  $region17: #{conv_block_forward.3} parent=0 // pred_fallthru
    _
  %v18 = vld [vmem:[%s0] sm:$0xf]
  %v19 = vld [vmem:[%s0 + $0x4] sm:$0xf]
  %v20 = vld [vmem:[%s0 + $0x8] sm:$0xf]
  %v21 = vld [vmem:[%s0 + $0xc] sm:$0xf]
  %v22 = vld [vmem:[%s0 + $0x10] sm:$0xf]
  %v23 = vld [vmem:[%s0 + $0x14] sm:$0xf]
  %v24 = vld [vmem:[%s0 + $0x18] sm:$0xf]
  %v25 = vld [vmem:[%s0 + $0x1c] sm:$0xf]
  %v26 = vld [vmem:[%s0 + $0x20] sm:$0xf]
  %v27 = vld [vmem:[%s0 + $0x24] sm:$0xf]
  %v28 = vld [vmem:[%s0 + $0x28] sm:$0xf]
  %v29 = vld [vmem:[%s0 + $0x2c] sm:$0xf]
  %v30 = vld [vmem:[%s0 + $0x30] sm:$0xf]
  %v31 = vld [vmem:[%s0 + $0x34] sm:$0xf]
  %v32 = vld [vmem:[%s0 + $0x38] sm:$0xf]
  %v33 = vld [vmem:[%s0 + $0x3c] sm:$0xf]
  %v34 = vld [vmem:[%s0 + $0x40] sm:$0xf]
  %v35 = vld [vmem:[%s0 + $0x44] sm:$0xf]
  %v36 = vld [vmem:[%s0 + $0x48] sm:$0xf]
  %v37 = vld [vmem:[%s0 + $0x4c] sm:$0xf]
  %v38 = vld [vmem:[%s0 + $0x50] sm:$0xf]
  %v39 = vld [vmem:[%s0 + $0x54] sm:$0xf]
  %v40 = vld [vmem:[%s0 + $0x58] sm:$0xf]
  %v41 = vld [vmem:[%s0 + $0x5c] sm:$0xf]
  %v42 = vld [vmem:[%s0 + $0x60] sm:$0xf]
  %v43 = vld [vmem:[%s0 + $0x64] sm:$0xf]
  %v44 = vld [vmem:[%s0 + $0x68] sm:$0xf]
  %v45 = vld [vmem:[%s0 + $0x6c] sm:$0xf]
  %v46 = vld [vmem:[%s0 + $0x70] sm:$0xf]
  %v47 = vld [vmem:[%s0 + $0x74] sm:$0xf]
  %v48 = vld [vmem:[%s0 + $0x78] sm:$0xf]
  %v49 = vld [vmem:[%s0 + $0x7c] sm:$0xf]
  %v50 = vld [vmem:[%s0 + $0x80] sm:$0xf]
  %v51 = vld [vmem:[%s0 + $0x84] sm:$0xf]
  %v52 = vld [vmem:[%s0 + $0x88] sm:$0xf]
  %v53 = vld [vmem:[%s0 + $0x8c] sm:$0xf]
  %v54 = vld [vmem:[%s0 + $0x90] sm:$0xf]
  %v55 = vld [vmem:[%s0 + $0x94] sm:$0xf]
  %v56 = vld [vmem:[%s0 + $0x98] sm:$0xf]
  %v57 = vld [vmem:[%s0 + $0x9c] sm:$0xf]
  %v58 = vld [vmem:[%s0 + $0xa0] sm:$0xf]
  %v59 = vld [vmem:[%s0 + $0xa4] sm:$0xf]
  %v60 = vld [vmem:[%s0 + $0xa8] sm:$0xf]
  %v61 = vld [vmem:[%s0 + $0xac] sm:$0xf]
  %v62 = vld [vmem:[%s0 + $0xb0] sm:$0xf]
  %v63 = vld [vmem:[%s0 + $0xb4] sm:$0xf]
  %v64 = vld [vmem:[%s0 + $0xb8] sm:$0xf]
  %v65 = vld [vmem:[%s0 + $0xbc] sm:$0xf]
  %v66 = vld [vmem:[%s0 + $0xc0] sm:$0xf]
  %v67 = vld [vmem:[%s0 + $0xc4] sm:$0xf]
  %v68 = vld [vmem:[%s0 + $0xc8] sm:$0xf]
  %v69 = vld [vmem:[%s0 + $0xcc] sm:$0xf]
  %v70 = vld [vmem:[%s0 + $0xd0] sm:$0xf]
  %v71 = vld [vmem:[%s0 + $0xd4] sm:$0xf]
  %v72 = vld [vmem:[%s0 + $0xd8] sm:$0xf]
  %v73 = vld [vmem:[%s0 + $0xdc] sm:$0xf]
  %v74 = vld [vmem:[%s0 + $0xe0] sm:$0xf]
  %v75 = vld [vmem:[%s0 + $0xe4] sm:$0xf]
  %v76 = vld [vmem:[%s0 + $0xe8] sm:$0xf]
  %v77 = vld [vmem:[%s0 + $0xec] sm:$0xf]
  %v78 = vld [vmem:[%s0 + $0xf0] sm:$0xf]
  %v79 = vld [vmem:[%s0 + $0xf4] sm:$0xf]
  %v80 = vld [vmem:[%s0 + $0xf8] sm:$0xf]
  %v81 = vld [vmem:[%s0 + $0xfc] sm:$0xf]
  %v82 = vld [vmem:[%s1] sm:$0xf]
  %v83 = vld [vmem:[%s1 + $0x4] sm:$0xf]
  %v84 = vld [vmem:[%s1 + $0x8] sm:$0xf]
  %v85 = vld [vmem:[%s1 + $0xc] sm:$0xf]
  %v86 = vld [vmem:[%s1 + $0x10] sm:$0xf]
  %v87 = vld [vmem:[%s1 + $0x14] sm:$0xf]
  %v88 = vld [vmem:[%s1 + $0x18] sm:$0xf]
  %v89 = vld [vmem:[%s1 + $0x1c] sm:$0xf]
  %v90 = vld [vmem:[%s1 + $0x20] sm:$0xf]
  %v91 = vld [vmem:[%s1 + $0x24] sm:$0xf]
  %v92 = vld [vmem:[%s1 + $0x28] sm:$0xf]
  %v93 = vld [vmem:[%s1 + $0x2c] sm:$0xf]
  %v94 = vld [vmem:[%s1 + $0x30] sm:$0xf]
  %v95 = vld [vmem:[%s1 + $0x34] sm:$0xf]
  %v96 = vld [vmem:[%s1 + $0x38] sm:$0xf]
  %v97 = vld [vmem:[%s1 + $0x3c] sm:$0xf]
  %v162 = vunpack.c.l.b16 %v18
  %v163 = vunpack.c.l.b16 %v19
  %v164 = vunpack.c.l.b16 %v20
  %v165 = vunpack.c.l.b16 %v21
  %v166 = vunpack.c.l.b16 %v22
  %v167 = vunpack.c.l.b16 %v23
  %v168 = vunpack.c.l.b16 %v24
  %v169 = vunpack.c.l.b16 %v25
  %v170 = vunpack.c.l.b16 %v26
  %v171 = vunpack.c.l.b16 %v27
  %v172 = vunpack.c.l.b16 %v28
  %v173 = vunpack.c.l.b16 %v29
  %v174 = vunpack.c.l.b16 %v30
  %v175 = vunpack.c.l.b16 %v31
  %v176 = vunpack.c.l.b16 %v32
  %v177 = vunpack.c.l.b16 %v33
  %v178 = vunpack.c.l.b16 %v34
  %v179 = vunpack.c.l.b16 %v35
  %v180 = vunpack.c.l.b16 %v36
  %v181 = vunpack.c.l.b16 %v37
  %v182 = vunpack.c.l.b16 %v38
  %v183 = vunpack.c.l.b16 %v39
  %v184 = vunpack.c.l.b16 %v40
  %v185 = vunpack.c.l.b16 %v41
  %v186 = vunpack.c.l.b16 %v42
  %v187 = vunpack.c.l.b16 %v43
  %v188 = vunpack.c.l.b16 %v44
  %v189 = vunpack.c.l.b16 %v45
  %v190 = vunpack.c.l.b16 %v46
  %v191 = vunpack.c.l.b16 %v47
  %v192 = vunpack.c.l.b16 %v48
  %v193 = vunpack.c.l.b16 %v49
  %v194 = vunpack.c.l.b16 %v50
  %v195 = vunpack.c.l.b16 %v51
  %v196 = vunpack.c.l.b16 %v52
  %v197 = vunpack.c.l.b16 %v53
  %v198 = vunpack.c.l.b16 %v54
  %v199 = vunpack.c.l.b16 %v55
  %v200 = vunpack.c.l.b16 %v56
  %v201 = vunpack.c.l.b16 %v57
  %v202 = vunpack.c.l.b16 %v58
  %v203 = vunpack.c.l.b16 %v59
  %v204 = vunpack.c.l.b16 %v60
  %v205 = vunpack.c.l.b16 %v61
  %v206 = vunpack.c.l.b16 %v62
  %v207 = vunpack.c.l.b16 %v63
  %v208 = vunpack.c.l.b16 %v64
  %v209 = vunpack.c.l.b16 %v65
  %v210 = vunpack.c.l.b16 %v66
  %v211 = vunpack.c.l.b16 %v67
  %v212 = vunpack.c.l.b16 %v68
  %v213 = vunpack.c.l.b16 %v69
  %v214 = vunpack.c.l.b16 %v70
  %v215 = vunpack.c.l.b16 %v71
  %v216 = vunpack.c.l.b16 %v72
  %v217 = vunpack.c.l.b16 %v73
  %v218 = vunpack.c.l.b16 %v74
  %v219 = vunpack.c.l.b16 %v75
  %v220 = vunpack.c.l.b16 %v76
  %v221 = vunpack.c.l.b16 %v77
  %v222 = vunpack.c.l.b16 %v78
  %v223 = vunpack.c.l.b16 %v79
  %v224 = vunpack.c.l.b16 %v80
  %v225 = vunpack.c.l.b16 %v81
  %v226 = vpack.c.b16 %v163, %v162
  %v227 = vpack.c.b16 %v165, %v164
  %v228 = vpack.c.b16 %v167, %v166
  %v229 = vpack.c.b16 %v169, %v168
  %v230 = vpack.c.b16 %v171, %v170
  %v231 = vpack.c.b16 %v173, %v172
  %v232 = vpack.c.b16 %v175, %v174
  %v233 = vpack.c.b16 %v177, %v176
  %v234 = vpack.c.b16 %v179, %v178
  %v235 = vpack.c.b16 %v181, %v180
  %v236 = vpack.c.b16 %v183, %v182
  %v237 = vpack.c.b16 %v185, %v184
  %v238 = vpack.c.b16 %v187, %v186
  %v239 = vpack.c.b16 %v189, %v188
  %v240 = vpack.c.b16 %v191, %v190
  %v241 = vpack.c.b16 %v193, %v192
  %v242 = vpack.c.b16 %v195, %v194
  %v243 = vpack.c.b16 %v197, %v196
  %v244 = vpack.c.b16 %v199, %v198
  %v245 = vpack.c.b16 %v201, %v200
  %v246 = vpack.c.b16 %v203, %v202
  %v247 = vpack.c.b16 %v205, %v204
  %v248 = vpack.c.b16 %v207, %v206
  %v249 = vpack.c.b16 %v209, %v208
  %v250 = vpack.c.b16 %v211, %v210
  %v251 = vpack.c.b16 %v213, %v212
  %v252 = vpack.c.b16 %v215, %v214
  %v253 = vpack.c.b16 %v217, %v216
  %v254 = vpack.c.b16 %v219, %v218
  %v255 = vpack.c.b16 %v221, %v220
  %v256 = vpack.c.b16 %v223, %v222
  %v257 = vpack.c.b16 %v225, %v224
  %v306 = vunpack.c.l.b16 %v82
  %v307 = vunpack.c.l.b16 %v83
  %v308 = vunpack.c.l.b16 %v84
  %v309 = vunpack.c.l.b16 %v85
  %v310 = vunpack.c.l.b16 %v86
  %v311 = vunpack.c.l.b16 %v87
  %v312 = vunpack.c.l.b16 %v88
  %v313 = vunpack.c.l.b16 %v89
  %v314 = vunpack.c.l.b16 %v90
  %v315 = vunpack.c.l.b16 %v91
  %v316 = vunpack.c.l.b16 %v92
  %v317 = vunpack.c.l.b16 %v93
  %v318 = vunpack.c.l.b16 %v94
  %v319 = vunpack.c.l.b16 %v95
  %v320 = vunpack.c.l.b16 %v96
  %v321 = vunpack.c.l.b16 %v97
  %v322 = vpack.c.b16 %v307, %v306
  %v323 = vpack.c.b16 %v309, %v308
  %v324 = vpack.c.b16 %v311, %v310
  %v325 = vpack.c.b16 %v313, %v312
  %v326 = vpack.c.b16 %v315, %v314
  %v327 = vpack.c.b16 %v317, %v316
  %v328 = vpack.c.b16 %v319, %v318
  %v329 = vpack.c.b16 %v321, %v320
  %338 = vmatprep.subr.bf16.mxu0 0
  %339 = vmatpush1.bf16.msra.mxu0 %v329
  %340 = vmatprep.subr.bf16.mxu0 0
  %341 = vmatpush1.bf16.msra.mxu0 %v328
  %342 = vmatprep.subr.bf16.mxu0 0
  %343 = vmatpush1.bf16.msra.mxu0 %v327
  %344 = vmatprep.subr.bf16.mxu0 0
  %345 = vmatpush1.bf16.msra.mxu0 %v326
  %346 = vmatprep.subr.bf16.mxu0 0
  %347 = vmatpush1.bf16.msra.mxu0 %v325
  %348 = vmatprep.subr.bf16.mxu0 0
  %349 = vmatpush1.bf16.msra.mxu0 %v324
  %350 = vmatprep.subr.bf16.mxu0 0
  %351 = vmatpush1.bf16.msra.mxu0 %v323
  %352 = vmatprep.subr.bf16.mxu0 0
  %353 = vmatpush1.bf16.msra.mxu0 %v322
  %354 = vmatprep.subr.bf16.mxu0 0
  %355 = vmatpush2.bf16.msra.mxu0 0
  %356 = vmatprep.subr.bf16.mxu0 0
  %357 = vmatpush2.bf16.msra.mxu0 0
  %358 = vmatprep.subr.bf16.mxu0 0
  %359 = vmatpush2.bf16.msra.mxu0 0
  %360 = vmatprep.subr.bf16.mxu0 0
  %361 = vmatpush2.bf16.msra.mxu0 0
  %362 = vmatprep.subr.bf16.mxu0 0
  %363 = vmatpush2.bf16.msra.mxu0 0
  %364 = vmatprep.subr.bf16.mxu0 0
  %365 = vmatpush2.bf16.msra.mxu0 0
  %366 = vmatprep.subr.bf16.mxu0 0
  %367 = vmatpush2.bf16.msra.mxu0 0
  %368 = vmatprep.subr.bf16.mxu0 0
  %369 = vmatpush2.bf16.msra.mxu0 0
  %370 = vmatprep.mubr.bf16.mxu0 0
  %371 = vmatmul.mubr.bf16.gmra.mxu0 %v226
  %v372 = vpop.f32.mrf.mxu0
  %v373 = vadd.f32 0.0, %v372
  %v374 = vpop.f32.mrf.mxu0
  %v375 = vpop.f32.mrf.mxu0
  %v376 = vadd.f32 0.0, %v375
  %v377 = vpop.f32.mrf.mxu0
  %378 = vmatprep.mubr.bf16.mxu0 0
  %379 = vmatmul.mubr.bf16.gmra.mxu0 %v227
  %v380 = vpop.f32.mrf.mxu0
  %v381 = vadd.f32 0.0, %v380
  %v382 = vpop.f32.mrf.mxu0
  %v383 = vpop.f32.mrf.mxu0
  %v384 = vadd.f32 0.0, %v383
  %v385 = vpop.f32.mrf.mxu0
  %386 = vmatprep.mubr.bf16.mxu0 0
  %387 = vmatmul.mubr.bf16.gmra.mxu0 %v228
  %v388 = vpop.f32.mrf.mxu0
  %v389 = vadd.f32 0.0, %v388
  %v390 = vpop.f32.mrf.mxu0
  %v391 = vpop.f32.mrf.mxu0
  %v392 = vadd.f32 0.0, %v391
  %v393 = vpop.f32.mrf.mxu0
  %394 = vmatprep.mubr.bf16.mxu0 0
  %395 = vmatmul.mubr.bf16.gmra.mxu0 %v229
  %v396 = vpop.f32.mrf.mxu0
  %v397 = vadd.f32 0.0, %v396
  %v398 = vpop.f32.mrf.mxu0
  %v399 = vpop.f32.mrf.mxu0
  %v400 = vadd.f32 0.0, %v399
  %v401 = vpop.f32.mrf.mxu0
  %402 = vmatprep.mubr.bf16.mxu0 0
  %403 = vmatmul.mubr.bf16.gmra.mxu0 %v230
  %v404 = vpop.f32.mrf.mxu0
  %v405 = vadd.f32 0.0, %v404
  %v406 = vpop.f32.mrf.mxu0
  %v407 = vpop.f32.mrf.mxu0
  %v408 = vadd.f32 0.0, %v407
  %v409 = vpop.f32.mrf.mxu0
  %410 = vmatprep.mubr.bf16.mxu0 0
  %411 = vmatmul.mubr.bf16.gmra.mxu0 %v231
  %v412 = vpop.f32.mrf.mxu0
  %v413 = vadd.f32 0.0, %v412
  %v414 = vpop.f32.mrf.mxu0
  %v415 = vpop.f32.mrf.mxu0
  %v416 = vadd.f32 0.0, %v415
  %v417 = vpop.f32.mrf.mxu0
  %418 = vmatprep.mubr.bf16.mxu0 0
  %419 = vmatmul.mubr.bf16.gmra.mxu0 %v232
  %v420 = vpop.f32.mrf.mxu0
  %v421 = vadd.f32 0.0, %v420
  %v422 = vpop.f32.mrf.mxu0
  %v423 = vpop.f32.mrf.mxu0
  %v424 = vadd.f32 0.0, %v423
  %v425 = vpop.f32.mrf.mxu0
  %426 = vmatprep.mubr.bf16.mxu0 0
  %427 = vmatmul.mubr.bf16.gmra.mxu0 %v233
  %v428 = vpop.f32.mrf.mxu0
  %v429 = vadd.f32 0.0, %v428
  %v430 = vpop.f32.mrf.mxu0
  %v431 = vpop.f32.mrf.mxu0
  %v432 = vadd.f32 0.0, %v431
  %v433 = vpop.f32.mrf.mxu0
  %434 = vmatprep.mubr.bf16.mxu0 0
  %435 = vmatmul.mubr.bf16.gmra.mxu0 %v234
  %v436 = vpop.f32.mrf.mxu0
  %v437 = vadd.f32 0.0, %v436
  %v438 = vpop.f32.mrf.mxu0
  %v439 = vpop.f32.mrf.mxu0
  %v440 = vadd.f32 0.0, %v439
  %v441 = vpop.f32.mrf.mxu0
  %442 = vmatprep.mubr.bf16.mxu0 0
  %443 = vmatmul.mubr.bf16.gmra.mxu0 %v235
  %v444 = vpop.f32.mrf.mxu0
  %v445 = vadd.f32 0.0, %v444
  %v446 = vpop.f32.mrf.mxu0
  %v447 = vpop.f32.mrf.mxu0
  %v448 = vadd.f32 0.0, %v447
  %v449 = vpop.f32.mrf.mxu0
  %450 = vmatprep.mubr.bf16.mxu0 0
  %451 = vmatmul.mubr.bf16.gmra.mxu0 %v236
  %v452 = vpop.f32.mrf.mxu0
  %v453 = vadd.f32 0.0, %v452
  %v454 = vpop.f32.mrf.mxu0
  %v455 = vpop.f32.mrf.mxu0
  %v456 = vadd.f32 0.0, %v455
  %v457 = vpop.f32.mrf.mxu0
  %458 = vmatprep.mubr.bf16.mxu0 0
  %459 = vmatmul.mubr.bf16.gmra.mxu0 %v237
  %v460 = vpop.f32.mrf.mxu0
  %v461 = vadd.f32 0.0, %v460
  %v462 = vpop.f32.mrf.mxu0
  %v463 = vpop.f32.mrf.mxu0
  %v464 = vadd.f32 0.0, %v463
  %v465 = vpop.f32.mrf.mxu0
  %466 = vmatprep.mubr.bf16.mxu0 0
  %467 = vmatmul.mubr.bf16.gmra.mxu0 %v238
  %v468 = vpop.f32.mrf.mxu0
  %v469 = vadd.f32 0.0, %v468
  %v470 = vpop.f32.mrf.mxu0
  %v471 = vpop.f32.mrf.mxu0
  %v472 = vadd.f32 0.0, %v471
  %v473 = vpop.f32.mrf.mxu0
  %474 = vmatprep.mubr.bf16.mxu0 0
  %475 = vmatmul.mubr.bf16.gmra.mxu0 %v239
  %v476 = vpop.f32.mrf.mxu0
  %v477 = vadd.f32 0.0, %v476
  %v478 = vpop.f32.mrf.mxu0
  %v479 = vpop.f32.mrf.mxu0
  %v480 = vadd.f32 0.0, %v479
  %v481 = vpop.f32.mrf.mxu0
  %482 = vmatprep.mubr.bf16.mxu0 0
  %483 = vmatmul.mubr.bf16.gmra.mxu0 %v240
  %v484 = vpop.f32.mrf.mxu0
  %v485 = vadd.f32 0.0, %v484
  %v486 = vpop.f32.mrf.mxu0
  %v487 = vpop.f32.mrf.mxu0
  %v488 = vadd.f32 0.0, %v487
  %v489 = vpop.f32.mrf.mxu0
  %490 = vmatprep.mubr.bf16.mxu0 0
  %491 = vmatmul.mubr.bf16.gmra.mxu0 %v241
  %v492 = vpop.f32.mrf.mxu0
  %v493 = vadd.f32 0.0, %v492
  %v494 = vpop.f32.mrf.mxu0
  %v495 = vpop.f32.mrf.mxu0
  %v496 = vadd.f32 0.0, %v495
  %v497 = vpop.f32.mrf.mxu0
  %498 = vmatprep.mubr.bf16.mxu0 0
  %499 = vmatmul.mubr.bf16.gmra.mxu0 %v242
  %v500 = vpop.f32.mrf.mxu0
  %v501 = vadd.f32 0.0, %v500
  %v502 = vpop.f32.mrf.mxu0
  %v503 = vpop.f32.mrf.mxu0
  %v504 = vadd.f32 0.0, %v503
  %v505 = vpop.f32.mrf.mxu0
  %506 = vmatprep.mubr.bf16.mxu0 0
  %507 = vmatmul.mubr.bf16.gmra.mxu0 %v243
  %v508 = vpop.f32.mrf.mxu0
  %v509 = vadd.f32 0.0, %v508
  %v510 = vpop.f32.mrf.mxu0
  %v511 = vpop.f32.mrf.mxu0
  %v512 = vadd.f32 0.0, %v511
  %v513 = vpop.f32.mrf.mxu0
  %514 = vmatprep.mubr.bf16.mxu0 0
  %515 = vmatmul.mubr.bf16.gmra.mxu0 %v244
  %v516 = vpop.f32.mrf.mxu0
  %v517 = vadd.f32 0.0, %v516
  %v518 = vpop.f32.mrf.mxu0
  %v519 = vpop.f32.mrf.mxu0
  %v520 = vadd.f32 0.0, %v519
  %v521 = vpop.f32.mrf.mxu0
  %522 = vmatprep.mubr.bf16.mxu0 0
  %523 = vmatmul.mubr.bf16.gmra.mxu0 %v245
  %v524 = vpop.f32.mrf.mxu0
  %v525 = vadd.f32 0.0, %v524
  %v526 = vpop.f32.mrf.mxu0
  %v527 = vpop.f32.mrf.mxu0
  %v528 = vadd.f32 0.0, %v527
  %v529 = vpop.f32.mrf.mxu0
  %530 = vmatprep.mubr.bf16.mxu0 0
  %531 = vmatmul.mubr.bf16.gmra.mxu0 %v246
  %v532 = vpop.f32.mrf.mxu0
  %v533 = vadd.f32 0.0, %v532
  %v534 = vpop.f32.mrf.mxu0
  %v535 = vpop.f32.mrf.mxu0
  %v536 = vadd.f32 0.0, %v535
  %v537 = vpop.f32.mrf.mxu0
  %538 = vmatprep.mubr.bf16.mxu0 0
  %539 = vmatmul.mubr.bf16.gmra.mxu0 %v247
  %v540 = vpop.f32.mrf.mxu0
  %v541 = vadd.f32 0.0, %v540
  %v542 = vpop.f32.mrf.mxu0
  %v543 = vpop.f32.mrf.mxu0
  %v544 = vadd.f32 0.0, %v543
  %v545 = vpop.f32.mrf.mxu0
  %546 = vmatprep.mubr.bf16.mxu0 0
  %547 = vmatmul.mubr.bf16.gmra.mxu0 %v248
  %v548 = vpop.f32.mrf.mxu0
  %v549 = vadd.f32 0.0, %v548
  %v550 = vpop.f32.mrf.mxu0
  %v551 = vpop.f32.mrf.mxu0
  %v552 = vadd.f32 0.0, %v551
  %v553 = vpop.f32.mrf.mxu0
  %554 = vmatprep.mubr.bf16.mxu0 0
  %555 = vmatmul.mubr.bf16.gmra.mxu0 %v249
  %v556 = vpop.f32.mrf.mxu0
  %v557 = vadd.f32 0.0, %v556
  %v558 = vpop.f32.mrf.mxu0
  %v559 = vpop.f32.mrf.mxu0
  %v560 = vadd.f32 0.0, %v559
  %v561 = vpop.f32.mrf.mxu0
  %562 = vmatprep.mubr.bf16.mxu0 0
  %563 = vmatmul.mubr.bf16.gmra.mxu0 %v250
  %v564 = vpop.f32.mrf.mxu0
  %v565 = vadd.f32 0.0, %v564
  %v566 = vpop.f32.mrf.mxu0
  %v567 = vpop.f32.mrf.mxu0
  %v568 = vadd.f32 0.0, %v567
  %v569 = vpop.f32.mrf.mxu0
  %570 = vmatprep.mubr.bf16.mxu0 0
  %571 = vmatmul.mubr.bf16.gmra.mxu0 %v251
  %v572 = vpop.f32.mrf.mxu0
  %v573 = vadd.f32 0.0, %v572
  %v574 = vpop.f32.mrf.mxu0
  %v575 = vpop.f32.mrf.mxu0
  %v576 = vadd.f32 0.0, %v575
  %v577 = vpop.f32.mrf.mxu0
  %578 = vmatprep.mubr.bf16.mxu0 0
  %579 = vmatmul.mubr.bf16.gmra.mxu0 %v252
  %v580 = vpop.f32.mrf.mxu0
  %v581 = vadd.f32 0.0, %v580
  %v582 = vpop.f32.mrf.mxu0
  %v583 = vpop.f32.mrf.mxu0
  %v584 = vadd.f32 0.0, %v583
  %v585 = vpop.f32.mrf.mxu0
  %586 = vmatprep.mubr.bf16.mxu0 0
  %587 = vmatmul.mubr.bf16.gmra.mxu0 %v253
  %v588 = vpop.f32.mrf.mxu0
  %v589 = vadd.f32 0.0, %v588
  %v590 = vpop.f32.mrf.mxu0
  %v591 = vpop.f32.mrf.mxu0
  %v592 = vadd.f32 0.0, %v591
  %v593 = vpop.f32.mrf.mxu0
  %594 = vmatprep.mubr.bf16.mxu0 0
  %595 = vmatmul.mubr.bf16.gmra.mxu0 %v254
  %v596 = vpop.f32.mrf.mxu0
  %v597 = vadd.f32 0.0, %v596
  %v598 = vpop.f32.mrf.mxu0
  %v599 = vpop.f32.mrf.mxu0
  %v600 = vadd.f32 0.0, %v599
  %v601 = vpop.f32.mrf.mxu0
  %602 = vmatprep.mubr.bf16.mxu0 0
  %603 = vmatmul.mubr.bf16.gmra.mxu0 %v255
  %v604 = vpop.f32.mrf.mxu0
  %v605 = vadd.f32 0.0, %v604
  %v606 = vpop.f32.mrf.mxu0
  %v607 = vpop.f32.mrf.mxu0
  %v608 = vadd.f32 0.0, %v607
  %v609 = vpop.f32.mrf.mxu0
  %610 = vmatprep.mubr.bf16.mxu0 0
  %611 = vmatmul.mubr.bf16.gmra.mxu0 %v256
  %v612 = vpop.f32.mrf.mxu0
  %v613 = vadd.f32 0.0, %v612
  %v614 = vpop.f32.mrf.mxu0
  %v615 = vpop.f32.mrf.mxu0
  %v616 = vadd.f32 0.0, %v615
  %v617 = vpop.f32.mrf.mxu0
  %618 = vmatprep.mubr.bf16.mxu0 0
  %619 = vmatmul.mubr.bf16.gmra.mxu0 %v257
  %v620 = vpop.f32.mrf.mxu0
  %v621 = vadd.f32 0.0, %v620
  %v622 = vpop.f32.mrf.mxu0
  %v623 = vpop.f32.mrf.mxu0
  %v624 = vadd.f32 0.0, %v623
  %v625 = vpop.f32.mrf.mxu0
  %626 = vdwg.mxu0
  %v627 = vld [vmem:[%s2] sm:$0x1]
  %v629 = vlaneseq
  %v630 = vshrl.u32 %v629, 7
  %v631 = vsub.s32 0, %v630
  %v632 = vrot.slane %v627, %v631
  %v634 = vmul.f32 %v373, %v632
  %v635 = vmul.f32 %v376, %v632
  %v636 = vmul.f32 %v381, %v632
  %v637 = vmul.f32 %v384, %v632
  %v638 = vmul.f32 %v389, %v632
  %v639 = vmul.f32 %v392, %v632
  %v640 = vmul.f32 %v397, %v632
  %v641 = vmul.f32 %v400, %v632
  %v642 = vmul.f32 %v405, %v632
  %v643 = vmul.f32 %v408, %v632
  %v644 = vmul.f32 %v413, %v632
  %v645 = vmul.f32 %v416, %v632
  %v646 = vmul.f32 %v421, %v632
  %v647 = vmul.f32 %v424, %v632
  %v648 = vmul.f32 %v429, %v632
  %v649 = vmul.f32 %v432, %v632
  %v650 = vmul.f32 %v437, %v632
  %v651 = vmul.f32 %v440, %v632
  %v652 = vmul.f32 %v445, %v632
  %v653 = vmul.f32 %v448, %v632
  %v654 = vmul.f32 %v453, %v632
  %v655 = vmul.f32 %v456, %v632
  %v656 = vmul.f32 %v461, %v632
  %v657 = vmul.f32 %v464, %v632
  %v658 = vmul.f32 %v469, %v632
  %v659 = vmul.f32 %v472, %v632
  %v660 = vmul.f32 %v477, %v632
  %v661 = vmul.f32 %v480, %v632
  %v662 = vmul.f32 %v485, %v632
  %v663 = vmul.f32 %v488, %v632
  %v664 = vmul.f32 %v493, %v632
  %v665 = vmul.f32 %v496, %v632
  %v666 = vmul.f32 %v501, %v632
  %v667 = vmul.f32 %v504, %v632
  %v668 = vmul.f32 %v509, %v632
  %v669 = vmul.f32 %v512, %v632
  %v670 = vmul.f32 %v517, %v632
  %v671 = vmul.f32 %v520, %v632
  %v672 = vmul.f32 %v525, %v632
  %v673 = vmul.f32 %v528, %v632
  %v674 = vmul.f32 %v533, %v632
  %v675 = vmul.f32 %v536, %v632
  %v676 = vmul.f32 %v541, %v632
  %v677 = vmul.f32 %v544, %v632
  %v678 = vmul.f32 %v549, %v632
  %v679 = vmul.f32 %v552, %v632
  %v680 = vmul.f32 %v557, %v632
  %v681 = vmul.f32 %v560, %v632
  %v682 = vmul.f32 %v565, %v632
  %v683 = vmul.f32 %v568, %v632
  %v684 = vmul.f32 %v573, %v632
  %v685 = vmul.f32 %v576, %v632
  %v686 = vmul.f32 %v581, %v632
  %v687 = vmul.f32 %v584, %v632
  %v688 = vmul.f32 %v589, %v632
  %v689 = vmul.f32 %v592, %v632
  %v690 = vmul.f32 %v597, %v632
  %v691 = vmul.f32 %v600, %v632
  %v692 = vmul.f32 %v605, %v632
  %v693 = vmul.f32 %v608, %v632
  %v694 = vmul.f32 %v613, %v632
  %v695 = vmul.f32 %v616, %v632
  %v696 = vmul.f32 %v621, %v632
  %v697 = vmul.f32 %v624, %v632
  %v698 = vld [vmem:[%s3] sm:$0x1]
  %v700 = vlaneseq
  %v701 = vshrl.u32 %v700, 7
  %v702 = vsub.s32 0, %v701
  %v703 = vrot.slane %v698, %v702
  %v705 = vadd.f32 %v634, %v703
  %v706 = vadd.f32 %v635, %v703
  %v707 = vadd.f32 %v636, %v703
  %v708 = vadd.f32 %v637, %v703
  %v709 = vadd.f32 %v638, %v703
  %v710 = vadd.f32 %v639, %v703
  %v711 = vadd.f32 %v640, %v703
  %v712 = vadd.f32 %v641, %v703
  %v713 = vadd.f32 %v642, %v703
  %v714 = vadd.f32 %v643, %v703
  %v715 = vadd.f32 %v644, %v703
  %v716 = vadd.f32 %v645, %v703
  %v717 = vadd.f32 %v646, %v703
  %v718 = vadd.f32 %v647, %v703
  %v719 = vadd.f32 %v648, %v703
  %v720 = vadd.f32 %v649, %v703
  %v721 = vadd.f32 %v650, %v703
  %v722 = vadd.f32 %v651, %v703
  %v723 = vadd.f32 %v652, %v703
  %v724 = vadd.f32 %v653, %v703
  %v725 = vadd.f32 %v654, %v703
  %v726 = vadd.f32 %v655, %v703
  %v727 = vadd.f32 %v656, %v703
  %v728 = vadd.f32 %v657, %v703
  %v729 = vadd.f32 %v658, %v703
  %v730 = vadd.f32 %v659, %v703
  %v731 = vadd.f32 %v660, %v703
  %v732 = vadd.f32 %v661, %v703
  %v733 = vadd.f32 %v662, %v703
  %v734 = vadd.f32 %v663, %v703
  %v735 = vadd.f32 %v664, %v703
  %v736 = vadd.f32 %v665, %v703
  %v737 = vadd.f32 %v666, %v703
  %v738 = vadd.f32 %v667, %v703
  %v739 = vadd.f32 %v668, %v703
  %v740 = vadd.f32 %v669, %v703
  %v741 = vadd.f32 %v670, %v703
  %v742 = vadd.f32 %v671, %v703
  %v743 = vadd.f32 %v672, %v703
  %v744 = vadd.f32 %v673, %v703
  %v745 = vadd.f32 %v674, %v703
  %v746 = vadd.f32 %v675, %v703
  %v747 = vadd.f32 %v676, %v703
  %v748 = vadd.f32 %v677, %v703
  %v749 = vadd.f32 %v678, %v703
  %v750 = vadd.f32 %v679, %v703
  %v751 = vadd.f32 %v680, %v703
  %v752 = vadd.f32 %v681, %v703
  %v753 = vadd.f32 %v682, %v703
  %v754 = vadd.f32 %v683, %v703
  %v755 = vadd.f32 %v684, %v703
  %v756 = vadd.f32 %v685, %v703
  %v757 = vadd.f32 %v686, %v703
  %v758 = vadd.f32 %v687, %v703
  %v759 = vadd.f32 %v688, %v703
  %v760 = vadd.f32 %v689, %v703
  %v761 = vadd.f32 %v690, %v703
  %v762 = vadd.f32 %v691, %v703
  %v763 = vadd.f32 %v692, %v703
  %v764 = vadd.f32 %v693, %v703
  %v765 = vadd.f32 %v694, %v703
  %v766 = vadd.f32 %v695, %v703
  %v767 = vadd.f32 %v696, %v703
  %v768 = vadd.f32 %v697, %v703
  %vm769 = vcmp.ge.f32.partialorder %v705, 0.0
  %vm770 = vcmp.ge.f32.partialorder %v706, 0.0
  %vm771 = vcmp.ge.f32.partialorder %v707, 0.0
  %vm772 = vcmp.ge.f32.partialorder %v708, 0.0
  %vm773 = vcmp.ge.f32.partialorder %v709, 0.0
  %vm774 = vcmp.ge.f32.partialorder %v710, 0.0
  %vm775 = vcmp.ge.f32.partialorder %v711, 0.0
  %vm776 = vcmp.ge.f32.partialorder %v712, 0.0
  %vm777 = vcmp.ge.f32.partialorder %v713, 0.0
  %vm778 = vcmp.ge.f32.partialorder %v714, 0.0
  %vm779 = vcmp.ge.f32.partialorder %v715, 0.0
  %vm780 = vcmp.ge.f32.partialorder %v716, 0.0
  %vm781 = vcmp.ge.f32.partialorder %v717, 0.0
  %vm782 = vcmp.ge.f32.partialorder %v718, 0.0
  %vm783 = vcmp.ge.f32.partialorder %v719, 0.0
  %vm784 = vcmp.ge.f32.partialorder %v720, 0.0
  %vm785 = vcmp.ge.f32.partialorder %v721, 0.0
  %vm786 = vcmp.ge.f32.partialorder %v722, 0.0
  %vm787 = vcmp.ge.f32.partialorder %v723, 0.0
  %vm788 = vcmp.ge.f32.partialorder %v724, 0.0
  %vm789 = vcmp.ge.f32.partialorder %v725, 0.0
  %vm790 = vcmp.ge.f32.partialorder %v726, 0.0
  %vm791 = vcmp.ge.f32.partialorder %v727, 0.0
  %vm792 = vcmp.ge.f32.partialorder %v728, 0.0
  %vm793 = vcmp.ge.f32.partialorder %v729, 0.0
  %vm794 = vcmp.ge.f32.partialorder %v730, 0.0
  %vm795 = vcmp.ge.f32.partialorder %v731, 0.0
  %vm796 = vcmp.ge.f32.partialorder %v732, 0.0
  %vm797 = vcmp.ge.f32.partialorder %v733, 0.0
  %vm798 = vcmp.ge.f32.partialorder %v734, 0.0
  %vm799 = vcmp.ge.f32.partialorder %v735, 0.0
  %vm800 = vcmp.ge.f32.partialorder %v736, 0.0
  %vm801 = vcmp.ge.f32.partialorder %v737, 0.0
  %vm802 = vcmp.ge.f32.partialorder %v738, 0.0
  %vm803 = vcmp.ge.f32.partialorder %v739, 0.0
  %vm804 = vcmp.ge.f32.partialorder %v740, 0.0
  %vm805 = vcmp.ge.f32.partialorder %v741, 0.0
  %vm806 = vcmp.ge.f32.partialorder %v742, 0.0
  %vm807 = vcmp.ge.f32.partialorder %v743, 0.0
  %vm808 = vcmp.ge.f32.partialorder %v744, 0.0
  %vm809 = vcmp.ge.f32.partialorder %v745, 0.0
  %vm810 = vcmp.ge.f32.partialorder %v746, 0.0
  %vm811 = vcmp.ge.f32.partialorder %v747, 0.0
  %vm812 = vcmp.ge.f32.partialorder %v748, 0.0
  %vm813 = vcmp.ge.f32.partialorder %v749, 0.0
  %vm814 = vcmp.ge.f32.partialorder %v750, 0.0
  %vm815 = vcmp.ge.f32.partialorder %v751, 0.0
  %vm816 = vcmp.ge.f32.partialorder %v752, 0.0
  %vm817 = vcmp.ge.f32.partialorder %v753, 0.0
  %vm818 = vcmp.ge.f32.partialorder %v754, 0.0
  %vm819 = vcmp.ge.f32.partialorder %v755, 0.0
  %vm820 = vcmp.ge.f32.partialorder %v756, 0.0
  %vm821 = vcmp.ge.f32.partialorder %v757, 0.0
  %vm822 = vcmp.ge.f32.partialorder %v758, 0.0
  %vm823 = vcmp.ge.f32.partialorder %v759, 0.0
  %vm824 = vcmp.ge.f32.partialorder %v760, 0.0
  %vm825 = vcmp.ge.f32.partialorder %v761, 0.0
  %vm826 = vcmp.ge.f32.partialorder %v762, 0.0
  %vm827 = vcmp.ge.f32.partialorder %v763, 0.0
  %vm828 = vcmp.ge.f32.partialorder %v764, 0.0
  %vm829 = vcmp.ge.f32.partialorder %v765, 0.0
  %vm830 = vcmp.ge.f32.partialorder %v766, 0.0
  %vm831 = vcmp.ge.f32.partialorder %v767, 0.0
  %vm832 = vcmp.ge.f32.partialorder %v768, 0.0
  %v833 = vmul.f32 %v705, 0.2
  %v834 = vmul.f32 %v706, 0.2
  %v835 = vmul.f32 %v707, 0.2
  %v836 = vmul.f32 %v708, 0.2
  %v837 = vmul.f32 %v709, 0.2
  %v838 = vmul.f32 %v710, 0.2
  %v839 = vmul.f32 %v711, 0.2
  %v840 = vmul.f32 %v712, 0.2
  %v841 = vmul.f32 %v713, 0.2
  %v842 = vmul.f32 %v714, 0.2
  %v843 = vmul.f32 %v715, 0.2
  %v844 = vmul.f32 %v716, 0.2
  %v845 = vmul.f32 %v717, 0.2
  %v846 = vmul.f32 %v718, 0.2
  %v847 = vmul.f32 %v719, 0.2
  %v848 = vmul.f32 %v720, 0.2
  %v849 = vmul.f32 %v721, 0.2
  %v850 = vmul.f32 %v722, 0.2
  %v851 = vmul.f32 %v723, 0.2
  %v852 = vmul.f32 %v724, 0.2
  %v853 = vmul.f32 %v725, 0.2
  %v854 = vmul.f32 %v726, 0.2
  %v855 = vmul.f32 %v727, 0.2
  %v856 = vmul.f32 %v728, 0.2
  %v857 = vmul.f32 %v729, 0.2
  %v858 = vmul.f32 %v730, 0.2
  %v859 = vmul.f32 %v731, 0.2
  %v860 = vmul.f32 %v732, 0.2
  %v861 = vmul.f32 %v733, 0.2
  %v862 = vmul.f32 %v734, 0.2
  %v863 = vmul.f32 %v735, 0.2
  %v864 = vmul.f32 %v736, 0.2
  %v865 = vmul.f32 %v737, 0.2
  %v866 = vmul.f32 %v738, 0.2
  %v867 = vmul.f32 %v739, 0.2
  %v868 = vmul.f32 %v740, 0.2
  %v869 = vmul.f32 %v741, 0.2
  %v870 = vmul.f32 %v742, 0.2
  %v871 = vmul.f32 %v743, 0.2
  %v872 = vmul.f32 %v744, 0.2
  %v873 = vmul.f32 %v745, 0.2
  %v874 = vmul.f32 %v746, 0.2
  %v875 = vmul.f32 %v747, 0.2
  %v876 = vmul.f32 %v748, 0.2
  %v877 = vmul.f32 %v749, 0.2
  %v878 = vmul.f32 %v750, 0.2
  %v879 = vmul.f32 %v751, 0.2
  %v880 = vmul.f32 %v752, 0.2
  %v881 = vmul.f32 %v753, 0.2
  %v882 = vmul.f32 %v754, 0.2
  %v883 = vmul.f32 %v755, 0.2
  %v884 = vmul.f32 %v756, 0.2
  %v885 = vmul.f32 %v757, 0.2
  %v886 = vmul.f32 %v758, 0.2
  %v887 = vmul.f32 %v759, 0.2
  %v888 = vmul.f32 %v760, 0.2
  %v889 = vmul.f32 %v761, 0.2
  %v890 = vmul.f32 %v762, 0.2
  %v891 = vmul.f32 %v763, 0.2
  %v892 = vmul.f32 %v764, 0.2
  %v893 = vmul.f32 %v765, 0.2
  %v894 = vmul.f32 %v766, 0.2
  %v895 = vmul.f32 %v767, 0.2
  %v896 = vmul.f32 %v768, 0.2
  %v897 = vsel %vm769, %v705, %v833
  %v898 = vsel %vm770, %v706, %v834
  %v899 = vsel %vm771, %v707, %v835
  %v900 = vsel %vm772, %v708, %v836
  %v901 = vsel %vm773, %v709, %v837
  %v902 = vsel %vm774, %v710, %v838
  %v903 = vsel %vm775, %v711, %v839
  %v904 = vsel %vm776, %v712, %v840
  %v905 = vsel %vm777, %v713, %v841
  %v906 = vsel %vm778, %v714, %v842
  %v907 = vsel %vm779, %v715, %v843
  %v908 = vsel %vm780, %v716, %v844
  %v909 = vsel %vm781, %v717, %v845
  %v910 = vsel %vm782, %v718, %v846
  %v911 = vsel %vm783, %v719, %v847
  %v912 = vsel %vm784, %v720, %v848
  %v913 = vsel %vm785, %v721, %v849
  %v914 = vsel %vm786, %v722, %v850
  %v915 = vsel %vm787, %v723, %v851
  %v916 = vsel %vm788, %v724, %v852
  %v917 = vsel %vm789, %v725, %v853
  %v918 = vsel %vm790, %v726, %v854
  %v919 = vsel %vm791, %v727, %v855
  %v920 = vsel %vm792, %v728, %v856
  %v921 = vsel %vm793, %v729, %v857
  %v922 = vsel %vm794, %v730, %v858
  %v923 = vsel %vm795, %v731, %v859
  %v924 = vsel %vm796, %v732, %v860
  %v925 = vsel %vm797, %v733, %v861
  %v926 = vsel %vm798, %v734, %v862
  %v927 = vsel %vm799, %v735, %v863
  %v928 = vsel %vm800, %v736, %v864
  %v929 = vsel %vm801, %v737, %v865
  %v930 = vsel %vm802, %v738, %v866
  %v931 = vsel %vm803, %v739, %v867
  %v932 = vsel %vm804, %v740, %v868
  %v933 = vsel %vm805, %v741, %v869
  %v934 = vsel %vm806, %v742, %v870
  %v935 = vsel %vm807, %v743, %v871
  %v936 = vsel %vm808, %v744, %v872
  %v937 = vsel %vm809, %v745, %v873
  %v938 = vsel %vm810, %v746, %v874
  %v939 = vsel %vm811, %v747, %v875
  %v940 = vsel %vm812, %v748, %v876
  %v941 = vsel %vm813, %v749, %v877
  %v942 = vsel %vm814, %v750, %v878
  %v943 = vsel %vm815, %v751, %v879
  %v944 = vsel %vm816, %v752, %v880
  %v945 = vsel %vm817, %v753, %v881
  %v946 = vsel %vm818, %v754, %v882
  %v947 = vsel %vm819, %v755, %v883
  %v948 = vsel %vm820, %v756, %v884
  %v949 = vsel %vm821, %v757, %v885
  %v950 = vsel %vm822, %v758, %v886
  %v951 = vsel %vm823, %v759, %v887
  %v952 = vsel %vm824, %v760, %v888
  %v953 = vsel %vm825, %v761, %v889
  %v954 = vsel %vm826, %v762, %v890
  %v955 = vsel %vm827, %v763, %v891
  %v956 = vsel %vm828, %v764, %v892
  %v957 = vsel %vm829, %v765, %v893
  %v958 = vsel %vm830, %v766, %v894
  %v959 = vsel %vm831, %v767, %v895
  %v960 = vsel %vm832, %v768, %v896
  %961 = vst [vmem:[%s4] sm:$0xff] %v897
  %962 = vst [vmem:[%s4 + $0x8] sm:$0xff] %v898
  %963 = vst [vmem:[%s4 + $0x10] sm:$0xff] %v899
  %964 = vst [vmem:[%s4 + $0x18] sm:$0xff] %v900
  %965 = vst [vmem:[%s4 + $0x20] sm:$0xff] %v901
  %966 = vst [vmem:[%s4 + $0x28] sm:$0xff] %v902
  %967 = vst [vmem:[%s4 + $0x30] sm:$0xff] %v903
  %968 = vst [vmem:[%s4 + $0x38] sm:$0xff] %v904
  %969 = vst [vmem:[%s4 + $0x40] sm:$0xff] %v905
  %970 = vst [vmem:[%s4 + $0x48] sm:$0xff] %v906
  %971 = vst [vmem:[%s4 + $0x50] sm:$0xff] %v907
  %972 = vst [vmem:[%s4 + $0x58] sm:$0xff] %v908
  %973 = vst [vmem:[%s4 + $0x60] sm:$0xff] %v909
  %974 = vst [vmem:[%s4 + $0x68] sm:$0xff] %v910
  %975 = vst [vmem:[%s4 + $0x70] sm:$0xff] %v911
  %976 = vst [vmem:[%s4 + $0x78] sm:$0xff] %v912
  %977 = vst [vmem:[%s4 + $0x80] sm:$0xff] %v913
  %978 = vst [vmem:[%s4 + $0x88] sm:$0xff] %v914
  %979 = vst [vmem:[%s4 + $0x90] sm:$0xff] %v915
  %980 = vst [vmem:[%s4 + $0x98] sm:$0xff] %v916
  %981 = vst [vmem:[%s4 + $0xa0] sm:$0xff] %v917
  %982 = vst [vmem:[%s4 + $0xa8] sm:$0xff] %v918
  %983 = vst [vmem:[%s4 + $0xb0] sm:$0xff] %v919
  %984 = vst [vmem:[%s4 + $0xb8] sm:$0xff] %v920
  %985 = vst [vmem:[%s4 + $0xc0] sm:$0xff] %v921
  %986 = vst [vmem:[%s4 + $0xc8] sm:$0xff] %v922
  %987 = vst [vmem:[%s4 + $0xd0] sm:$0xff] %v923
  %988 = vst [vmem:[%s4 + $0xd8] sm:$0xff] %v924
  %989 = vst [vmem:[%s4 + $0xe0] sm:$0xff] %v925
  %990 = vst [vmem:[%s4 + $0xe8] sm:$0xff] %v926
  %991 = vst [vmem:[%s4 + $0xf0] sm:$0xff] %v927
  %992 = vst [vmem:[%s4 + $0xf8] sm:$0xff] %v928
  %993 = vst [vmem:[%s4 + $0x100] sm:$0xff] %v929
  %994 = vst [vmem:[%s4 + $0x108] sm:$0xff] %v930
  %995 = vst [vmem:[%s4 + $0x110] sm:$0xff] %v931
  %996 = vst [vmem:[%s4 + $0x118] sm:$0xff] %v932
  %997 = vst [vmem:[%s4 + $0x120] sm:$0xff] %v933
  %998 = vst [vmem:[%s4 + $0x128] sm:$0xff] %v934
  %999 = vst [vmem:[%s4 + $0x130] sm:$0xff] %v935
  %1000 = vst [vmem:[%s4 + $0x138] sm:$0xff] %v936
  %1001 = vst [vmem:[%s4 + $0x140] sm:$0xff] %v937
  %1002 = vst [vmem:[%s4 + $0x148] sm:$0xff] %v938
  %1003 = vst [vmem:[%s4 + $0x150] sm:$0xff] %v939
  %1004 = vst [vmem:[%s4 + $0x158] sm:$0xff] %v940
  %1005 = vst [vmem:[%s4 + $0x160] sm:$0xff] %v941
  %1006 = vst [vmem:[%s4 + $0x168] sm:$0xff] %v942
  %1007 = vst [vmem:[%s4 + $0x170] sm:$0xff] %v943
  %1008 = vst [vmem:[%s4 + $0x178] sm:$0xff] %v944
  %1009 = vst [vmem:[%s4 + $0x180] sm:$0xff] %v945
  %1010 = vst [vmem:[%s4 + $0x188] sm:$0xff] %v946
  %1011 = vst [vmem:[%s4 + $0x190] sm:$0xff] %v947
  %1012 = vst [vmem:[%s4 + $0x198] sm:$0xff] %v948
  %1013 = vst [vmem:[%s4 + $0x1a0] sm:$0xff] %v949
  %1014 = vst [vmem:[%s4 + $0x1a8] sm:$0xff] %v950
  %1015 = vst [vmem:[%s4 + $0x1b0] sm:$0xff] %v951
  %1016 = vst [vmem:[%s4 + $0x1b8] sm:$0xff] %v952
  %1017 = vst [vmem:[%s4 + $0x1c0] sm:$0xff] %v953
  %1018 = vst [vmem:[%s4 + $0x1c8] sm:$0xff] %v954
  %1019 = vst [vmem:[%s4 + $0x1d0] sm:$0xff] %v955
  %1020 = vst [vmem:[%s4 + $0x1d8] sm:$0xff] %v956
  %1021 = vst [vmem:[%s4 + $0x1e0] sm:$0xff] %v957
  %1022 = vst [vmem:[%s4 + $0x1e8] sm:$0xff] %v958
  %1023 = vst [vmem:[%s4 + $0x1f0] sm:$0xff] %v959
  %1024 = vst [vmem:[%s4 + $0x1f8] sm:$0xff] %v960
  // Predicated region
  $region18: #{conv_block_forward.3} parent=0 // pred_check
    _
  $region19: #{conv_block_forward.3} parent=0 // pred_check_branch
    %1026 = sbr.rel (0) target = $region21
  $region20: #{conv_block_forward.3} parent=0 // pred_region
    _
  $region21: #{conv_block_forward.3} parent=0 // pred_fallthru
    _
  // Predicated region
  $region22: #{conv_block_forward.3} parent=0 // pred_check
    _
  $region23: #{conv_block_forward.3} parent=0 // pred_check_branch
    %1028 = sbr.rel (0) target = $region25
  $region24: #{conv_block_forward.3} parent=0 // pred_region
    _
  $region25: #{conv_block_forward.3} parent=0 // pred_fallthru
    _

</llo_original>
